<compile_context>
chip_gen: v7x
topology: tpu7x:2x2x1
jax: 0.10.0
libtpu: 0.0.40
codegen_flags: <defaults>
</compile_context>

<pallas_src>
from functools import partial

import numpy as np
import jax
import jax.numpy as jnp
from jax.experimental import pallas as pl
from jax.experimental.pallas import tpu as pltpu

LANE = 128


def _round_up(x, m):
    return ((x + m - 1) // m) * m


def _pad_channels(x, c_target):
    c = x.shape[-1]
    if c == c_target:
        return x
    cfg = [(0, 0)] * (x.ndim - 1) + [(0, c_target - c)]
    return jnp.pad(x, cfg)


def _pick_tn(co_p):
    """Cout tile width: 128 on v5e (4x128 MXUs), 256 on v6e/v7x when divisible."""
    if co_p % 256 != 0:
        return 128
    try:
        info = pltpu.get_tpu_info()
        name = str(getattr(info, "chip_version", "") or "").lower()
        if "v5" in name:
            return 128
    except Exception:
        pass
    return 256


# ------------------------------ Pallas kernel ------------------------------

def _conv3x3_kernel(*refs, stride_two, hout, wout, residual, relu):
    """Fused 3x3 conv (BN folded) + optional residual (identity / 1x1 proj) + ReLU.

    Activations arrive spatially pre-padded ("padded form": zero halo, width a
    multiple of 8); for stride 2 they arrive as the 4 parity images of the
    padded input.  Per kw, the conv is a chain of 3 MXU matmuls over contiguous
    leading-axis row slabs at full padded width; kw column offsets are applied
    once on the wide f32 accumulators in the epilogue.  The output is written
    back in padded form (zero halo written here) so it can feed the next conv
    with no wrapper pad pass.

    Ref order: x parts (4 parity images if stride_two else 1 padded image),
    weights [9, Cin_p, tn] (bf16, BN scale folded), bias [1, tn] (f32),
    [residual image], [folded 1x1 shortcut weights], output.
    """
    refs = list(refs)
    idx = 0
    n_x = 4 if stride_two else 1
    x_taps = refs[idx:idx + n_x]
    idx += n_x
    w_ref = refs[idx]; idx += 1
    b_ref = refs[idx]; idx += 1
    r_ref = None
    ws_ref = None
    if residual is not None:
        r_ref = refs[idx]; idx += 1
    if residual == "proj":
        ws_ref = refs[idx]; idx += 1
    o_ref = refs[idx]

    tn = w_ref.shape[-1]
    wsrc = x_taps[0].shape[2]          # padded source width (multiple of 8)

    # Per-kw wide accumulators.  The kh / Cin reduction is a chain of traced
    # adds feeding the MXU (no VMEM scratch read-modify-write).
    accs = []
    for kw in range(3):
        acc = None
        for kh in range(3):
            if stride_two:
                src = x_taps[(kh % 2) * 2 + (kw % 2)]
                h0 = kh // 2
            else:
                src = x_taps[0]
                h0 = kh
            slab = src[0, h0:h0 + hout, :, :]                 # contiguous H slice only
            xt = slab.reshape(hout * wsrc, slab.shape[-1])    # wsrc % 8 == 0 -> clean merge
            z = jnp.dot(xt, w_ref[kh * 3 + kw, :, :],
                        preferred_element_type=jnp.float32)
            acc = z if acc is None else acc + z
        accs.append(acc.reshape(hout, wsrc, tn))

    # Residual folded into the wide accumulator whose kw column offset matches
    # its own offset -> no extra slice/relayout for the residual path.
    if residual == "identity":
        # r_ref: padded form (1, hout+2, wsrc, tn); interior starts at (1, 1).
        accs[1] = accs[1] + r_ref[0, 1:1 + hout, :, :].astype(jnp.float32)
    elif residual == "proj":
        # r_ref: parity-(1,1) image == x[:, ::2, ::2, :]; 1x1 conv on the MXU.
        rmat = r_ref[0, 0:hout, :, :].reshape(hout * wsrc, r_ref.shape[-1])
        proj = jnp.dot(rmat, ws_ref[...], preferred_element_type=jnp.float32)
        accs[0] = accs[0] + proj.reshape(hout, wsrc, tn)

    offs = (0, 0, 1) if stride_two else (0, 1, 2)
    y = accs[0][:, offs[0]:offs[0] + wout, :]
    y = y + accs[1][:, offs[1]:offs[1] + wout, :]
    y = y + accs[2][:, offs[2]:offs[2] + wout, :]
    y = y + b_ref[...].reshape(1, 1, tn)
    if relu:
        y = jnp.maximum(y, 0.0)

    # Emit the next conv's input directly in padded form (zero halo written
    # here instead of an extra HBM pad pass in the wrapper).
    o_ref[...] = jnp.zeros_like(o_ref)
    o_ref[0, 1:1 + hout, 1:1 + wout, :] = y.astype(o_ref.dtype)


def _conv3x3_call(x_parts, w_fold, bias, residual_arr, ws_fold, *,
                  stride_two, hout, wout, residual, relu,
                  out_dtype=jnp.bfloat16):
    n = x_parts[0].shape[0]
    cin_p = w_fold.shape[1]
    co_p = w_fold.shape[2]
    tn = _pick_tn(co_p)
    n_j = co_p // tn
    hp_out = hout + 2
    wp_out = _round_up(wout + 2, 8)
    wsrc = x_parts[0].shape[2]
    assert wsrc % 8 == 0 and cin_p % LANE == 0 and co_p % tn == 0

    inputs, in_specs = [], []
    for xt in x_parts:
        hh, ww, cc = xt.shape[1], xt.shape[2], xt.shape[3]
        in_specs.append(pl.BlockSpec((1, hh, ww, cc), lambda j, b: (b, 0, 0, 0)))
        inputs.append(xt)
    # Constant along the inner (batch) axis -> weights DMA'd n_j times total.
    in_specs.append(pl.BlockSpec((9, cin_p, tn), lambda j, b: (0, 0, j)))
    inputs.append(w_fold)
    in_specs.append(pl.BlockSpec((1, tn), lambda j, b: (0, j)))
    inputs.append(bias)

    rbytes = 0
    if residual == "identity":
        assert residual_arr.shape[-1] == co_p
        assert residual_arr.shape[1] == hout + 2 and residual_arr.shape[2] == wsrc
        in_specs.append(pl.BlockSpec((1, hout + 2, wsrc, tn),
                                     lambda j, b: (b, 0, 0, j)))
        inputs.append(residual_arr)
        rbytes = (hout + 2) * wsrc * tn * residual_arr.dtype.itemsize
    elif residual == "proj":
        rh, rw, rc = residual_arr.shape[1], residual_arr.shape[2], residual_arr.shape[3]
        assert rw == wsrc and rh >= hout and rc % LANE == 0
        in_specs.append(pl.BlockSpec((1, rh, rw, rc), lambda j, b: (b, 0, 0, 0)))
        inputs.append(residual_arr)
        in_specs.append(pl.BlockSpec((rc, tn), lambda j, b: (0, j)))
        inputs.append(ws_fold)
        rbytes = rh * rw * rc * residual_arr.dtype.itemsize + rc * tn * 2

    out_spec = pl.BlockSpec((1, hp_out, wp_out, tn), lambda j, b: (b, 0, 0, j))
    out_shape = jax.ShapeDtypeStruct((n, hp_out, wp_out, co_p), out_dtype)

    # Computed VMEM budget (blocks are double-buffered by Pallas) so the request
    # also fits v7x's 64 MiB per TensorCore.
    xbytes = sum(int(np.prod(xt.shape[1:])) * xt.dtype.itemsize for xt in x_parts)
    wbytes = 9 * cin_p * tn * w_fold.dtype.itemsize
    obytes = hp_out * wp_out * tn * np.dtype(out_dtype).itemsize
    acc_bytes = 3 * hout * wsrc * tn * 4
    needed = 2 * (xbytes + wbytes + tn * 4 + rbytes + obytes) + 2 * acc_bytes
    vmem_limit = int(min(max(needed + (8 << 20), 16 << 20), 64 << 20))

    flops = 2 * n * 9 * hout * wsrc * cin_p * co_p
    if residual == "proj":
        flops += 2 * n * hout * wsrc * residual_arr.shape[-1] * co_p
    bytes_accessed = int(
        w_fold.size * w_fold.dtype.itemsize + bias.size * bias.dtype.itemsize
        + n_j * sum(x.size * x.dtype.itemsize for x in x_parts)
        + ((residual_arr.size * residual_arr.dtype.itemsize
            * (n_j if residual == "proj" else 1)) if residual else 0)
        + (ws_fold.size * ws_fold.dtype.itemsize if residual == "proj" else 0)
        + n * hp_out * wp_out * co_p * np.dtype(out_dtype).itemsize)

    kernel = partial(_conv3x3_kernel, stride_two=stride_two, hout=hout,
                     wout=wout, residual=residual, relu=relu)
    return pl.pallas_call(
        kernel,
        out_shape=out_shape,
        grid_spec=pltpu.PrefetchScalarGridSpec(
            num_scalar_prefetch=0,
            grid=(n_j, n),                    # Cout tiles outer, batch inner
            in_specs=in_specs,
            out_specs=out_spec,
        ),
        compiler_params=pltpu.CompilerParams(
            # The batch (inner) axis is the one to shard across v7x's 2 TCs so
            # the weight tile is not duplicated per Cout tile per core.
            dimension_semantics=("arbitrary", "parallel"),
            vmem_limit_bytes=vmem_limit,
        ),
        cost_estimate=pl.CostEstimate(flops=int(flops), transcendentals=0,
                                      bytes_accessed=bytes_accessed),
    )(*inputs)


# --------------------- padded-form / parity input prep ----------------------

def _make_padded(x_int):
    """Padded form for a stride-1 3x3 conv: zero halo, width padded to x8."""
    n, h, w, c = x_int.shape
    wp = _round_up(w + 2, 8)
    return jnp.pad(x_int, ((0, 0), (1, 1), (1, wp - w - 1), (0, 0)))


def _make_parity(x_int, hout, wout):
    """Parity (space-to-depth) split of the zero-padded input for a stride-2
    3x3 conv, so every in-kernel tap is a contiguous leading-axis slice.
    Parity (1,1) == x[:, ::2, ::2, :] and doubles as the 1x1 shortcut input."""
    # TODO(synk): do this split with in-kernel DMAs instead of an XLA pass.
    n, h, w, c = x_int.shape
    hpar = hout + 1
    wpar = _round_up(wout + 2, 8)
    xp = jnp.pad(x_int, ((0, 0), (1, 2 * hpar - h - 1), (1, 2 * wpar - w - 1), (0, 0)))
    return tuple(xp[:, a::2, b::2, :] for a in range(2) for b in range(2))


# --------------------- BN folding / weight & bias prep ----------------------

def _bn_fold(gamma, beta, mean, var, eps=1e-5):
    scale = gamma / jnp.sqrt(var + eps)
    bias = beta - mean * scale
    return scale.astype(jnp.float32), bias.astype(jnp.float32)


def _fold_conv3x3(w, scale, cin_p, co_p):
    # [co, ci, 3, 3] -> [9, cin_p, co_p] bf16 with the BN scale folded in.
    co, ci = w.shape[0], w.shape[1]
    wm = jnp.transpose(w, (2, 3, 1, 0)).reshape(9, ci, co) * scale[None, None, :]
    wm = jnp.pad(wm, ((0, 0), (0, cin_p - ci), (0, co_p - co)))
    return wm.astype(jnp.bfloat16)


def _fold_conv1x1(w, scale, cin_p, co_p):
    co, ci = w.shape[0], w.shape[1]
    wm = w.reshape(co, ci).T * scale[None, :]
    wm = jnp.pad(wm, ((0, cin_p - ci), (0, co_p - co)))
    return wm.astype(jnp.bfloat16)


def _pad_bias(bias, co_p):
    return jnp.pad(bias, (0, co_p - bias.shape[0])).reshape(1, co_p).astype(jnp.float32)


# ----------------------------- params / forward -----------------------------

def _init_bn(key, c):
    k1, k2, k3, k4 = jax.random.split(key, 4)
    gamma = 1.0 + 0.1 * jax.random.normal(k1, (c,), jnp.float32)
    beta = 0.1 * jax.random.normal(k2, (c,), jnp.float32)
    mean = 0.1 * jax.random.normal(k3, (c,), jnp.float32)
    var = 0.5 + jnp.abs(jax.random.normal(k4, (c,), jnp.float32))
    return gamma, beta, mean, var


def init_basic_block(key, c_in, c_out, downsampling):
    ks = jax.random.split(key, 6)
    p = {
        "downsampling": downsampling,
        "w1": 0.1 * jax.random.normal(ks[0], (c_out, c_in, 3, 3), jnp.float32),
        "bn1": _init_bn(ks[1], c_out),
        "w2": 0.1 * jax.random.normal(ks[2], (c_out, c_out, 3, 3), jnp.float32),
        "bn2": _init_bn(ks[3], c_out),
    }
    if c_in != c_out:  # should_apply_shortcut (expansion == 1)
        p["ws"] = 0.1 * jax.random.normal(ks[4], (c_out, c_in, 1, 1), jnp.float32)
        p["bns"] = _init_bn(ks[5], c_out)
    return p


def init_resnet_layer(key, in_channels, out_channels, n=1):
    downsampling = 2 if in_channels != out_channels else 1
    keys = jax.random.split(key, n)
    params = [init_basic_block(keys[0], in_channels, out_channels, downsampling)]
    for i in range(1, n):
        params.append(init_basic_block(keys[i], out_channels, out_channels, 1))
    return params


def fold_layer_params(params, c_in):
    """Fold BatchNorm (eval mode) into bf16 weights / f32 biases, once."""
    # TODO(synk): training-mode batch statistics are not reproduced.
    cin_p = _round_up(c_in, LANE)
    folded = []
    for p in params:
        c_out = p["w1"].shape[0]
        co_p = _round_up(c_out, LANE)
        s1, b1 = _bn_fold(*p["bn1"])
        s2, b2 = _bn_fold(*p["bn2"])
        fp = {
            "downsampling": p["downsampling"],
            "c_out": c_out, "cin_p": cin_p, "co_p": co_p,
            "w1": _fold_conv3x3(p["w1"], s1, cin_p, co_p),
            "b1": _pad_bias(b1, co_p),
            "w2": _fold_conv3x3(p["w2"], s2, co_p, co_p),
        }
        if "ws" in p:  # projection shortcut, fused into conv2
            ss, bs = _bn_fold(*p["bns"])
            fp["ws"] = _fold_conv1x1(p["ws"], ss, cin_p, co_p)
            fp["b2"] = _pad_bias(b2 + bs, co_p)
            fp["res"] = "proj"
        else:
            fp["ws"] = None
            fp["b2"] = _pad_bias(b2, co_p)
            fp["res"] = "identity"
        folded.append(fp)
        cin_p = co_p
    return folded


def resnet_layer_forward(x_nchw, folded_params):
    n, c_in, h, w = x_nchw.shape
    cin_p = folded_params[0]["cin_p"]
    x = jnp.transpose(x_nchw, (0, 2, 3, 1))                 # NHWC once, at entry
    x = _pad_channels(x, cin_p).astype(jnp.bfloat16)

    hcur, wcur = h, w
    x_form = None
    for bi, fp in enumerate(folded_params):
        ds = fp["downsampling"]
        if bi == 0:
            if ds == 2:
                hout = (hcur - 1) // 2 + 1
                wout = (wcur - 1) // 2 + 1
                parts = _make_parity(x, hout, wout)
                res_arr = parts[3]          # parity (1,1) == x[:, ::2, ::2, :]
            else:
                hout, wout = hcur, wcur
                x0 = _make_padded(x)        # the only wrapper pad pass in the layer
                parts = (x0,)
                res_arr = x0
        else:
            hout, wout = hcur, wcur
            parts = (x_form,)               # previous block output is already padded form
            res_arr = x_form

        # conv1 (3x3, stride=ds) + bn1 + ReLU
        h1 = _conv3x3_call(parts, fp["w1"], fp["b1"], None, None,
                           stride_two=(ds == 2), hout=hout, wout=wout,
                           residual=None, relu=True)
        # conv2 (3x3) + bn2 + shortcut (identity / 1x1 proj + bn) + add + ReLU, fused
        x_form = _conv3x3_call((h1,), fp["w2"], fp["b2"], res_arr, fp["ws"],
                               stride_two=False, hout=hout, wout=wout,
                               residual=fp["res"], relu=True)
        hcur, wcur = hout, wout

    c_out = folded_params[-1]["c_out"]
    y = x_form[:, 1:1 + hcur, 1:1 + wcur, :c_out].astype(jnp.float32)
    return jnp.transpose(y, (0, 3, 1, 2))                   # back to NCHW at exit


# ----------------------- pure-JAX reference (validation) --------------------

def _ref_conv_bn(x, w, bn, stride, pad):
    y = jax.lax.conv_general_dilated(
        x, w, window_strides=(stride, stride), padding=((pad, pad), (pad, pad)),
        dimension_numbers=("NCHW", "OIHW", "NCHW"))
    gamma, beta, mean, var = bn
    scale = gamma / jnp.sqrt(var + 1e-5)
    return y * scale[None, :, None, None] + (beta - mean * scale)[None, :, None, None]


def _ref_layer(x, params):
    for p in params:
        ds = p["downsampling"]
        h1 = jax.nn.relu(_ref_conv_bn(x, p["w1"], p["bn1"], ds, 1))
        h2 = _ref_conv_bn(h1, p["w2"], p["bn2"], 1, 1)
        r = _ref_conv_bn(x, p["ws"], p["bns"], ds, 0) if "ws" in p else x
        x = jax.nn.relu(h2 + r)
    return x


# ----------------------------------- main -----------------------------------

if __name__ == "__main__":
    key = jax.random.PRNGKey(0)
    kx, kp, kp2 = jax.random.split(key, 3)

    # Downsampling layer (projection shortcut, stride-2 first conv).
    N, C_in, H, W = 2, 4, 16, 16
    C_out = 8
    x = jax.random.normal(kx, (N, C_in, H, W), jnp.float32)
    params = init_resnet_layer(kp, C_in, C_out, n=1)
    folded = fold_layer_params(params, C_in)
    y = resnet_layer_forward(x, folded)
    jax.block_until_ready(y)
    assert y.shape == (N, C_out, H // 2, W // 2), y.shape
    assert bool(jnp.all(y >= 0.0))  # final ReLU
    y_ref = _ref_layer(x, params)
    np.testing.assert_allclose(np.asarray(y), np.asarray(y_ref), rtol=1e-1, atol=1e-1)

    # Identity-shortcut layer (in == out channels, two blocks, stride 1).
    params2 = init_resnet_layer(kp2, C_out, C_out, n=2)
    folded2 = fold_layer_params(params2, C_out)
    y2 = resnet_layer_forward(y, folded2)
    jax.block_until_ready(y2)
    assert y2.shape == y.shape, y2.shape
    assert bool(jnp.all(y2 >= 0.0))
    y2_ref = _ref_layer(y, params2)
    np.testing.assert_allclose(np.asarray(y2), np.asarray(y2_ref), rtol=1e-1, atol=1e-1)

    print("KERNEL_OK")
</pallas_src>

<mosaic_0001>
module attributes {stable_mosaic.version = 11 : i64} {
  func.func @_conv3x3_kernel(%arg0: i32, %arg1: i32, %arg2: memref<1x9x16x128xbf16, #tpu.memory_space<vmem>>, %arg3: memref<1x9x16x128xbf16, #tpu.memory_space<vmem>>, %arg4: memref<1x9x16x128xbf16, #tpu.memory_space<vmem>>, %arg5: memref<1x9x16x128xbf16, #tpu.memory_space<vmem>>, %arg6: memref<9x128x128xbf16, #tpu.memory_space<vmem>>, %arg7: memref<1x128xf32, #tpu.memory_space<vmem>>, %arg8: memref<1x10x16x128xbf16, #tpu.memory_space<vmem>>) attributes {dimension_semantics = [#tpu.dimension_semantics<arbitrary>, #tpu.dimension_semantics<parallel>], iteration_bounds = array<i64: 1, 2>, scalar_prefetch = 0 : i64, scratch_operands = 0 : i64, tpu.core_type = #tpu.core_type<tc>, window_params = [{transform_indices = @transform_0, window_bounds = array<i64: 1, 9, 16, 128>}, {transform_indices = @transform_1, window_bounds = array<i64: 1, 9, 16, 128>}, {transform_indices = @transform_2, window_bounds = array<i64: 1, 9, 16, 128>}, {transform_indices = @transform_3, window_bounds = array<i64: 1, 9, 16, 128>}, {transform_indices = @transform_4, window_bounds = array<i64: 9, 128, 128>}, {transform_indices = @transform_5, window_bounds = array<i64: 1, 128>}, {transform_indices = @transform_6, window_bounds = array<i64: 1, 10, 16, 128>}]} {
    %c0 = arith.constant 0 : index
    %c0_0 = arith.constant 0 : index
    %c0_1 = arith.constant 0 : index
    %c0_2 = arith.constant 0 : index
    %0 = vector.load %arg2[%c0, %c0_0, %c0_1, %c0_2] : memref<1x9x16x128xbf16, #tpu.memory_space<vmem>>, vector<1x8x16x128xbf16>
    %1 = vector.shape_cast %0 : vector<1x8x16x128xbf16> to vector<8x16x128xbf16>
    %2 = vector.shape_cast %1 : vector<8x16x128xbf16> to vector<128x128xbf16>
    %c0_3 = arith.constant 0 : index
    %c0_4 = arith.constant 0 : index
    %c0_5 = arith.constant 0 : index
    %3 = vector.load %arg6[%c0_3, %c0_4, %c0_5] : memref<9x128x128xbf16, #tpu.memory_space<vmem>>, vector<1x128x128xbf16>
    %4 = vector.shape_cast %3 : vector<1x128x128xbf16> to vector<128x128xbf16>
    %cst = arith.constant dense<0.000000e+00> : vector<128x128xf32>
    %5 = tpu.matmul %2, %4, %cst {dimension_numbers = #tpu.dot_dimension_numbers<[1], [0], [0], [1], [0, 0, 1, 1], [], []>} : vector<128x128xbf16>, vector<128x128xbf16>, vector<128x128xf32> -> vector<128x128xf32>
    %c0_6 = arith.constant 0 : index
    %c0_7 = arith.constant 0 : index
    %c0_8 = arith.constant 0 : index
    %c0_9 = arith.constant 0 : index
    %6 = vector.load %arg4[%c0_6, %c0_7, %c0_8, %c0_9] : memref<1x9x16x128xbf16, #tpu.memory_space<vmem>>, vector<1x8x16x128xbf16>
    %7 = vector.shape_cast %6 : vector<1x8x16x128xbf16> to vector<8x16x128xbf16>
    %8 = vector.shape_cast %7 : vector<8x16x128xbf16> to vector<128x128xbf16>
    %c3 = arith.constant 3 : index
    %c0_10 = arith.constant 0 : index
    %c0_11 = arith.constant 0 : index
    %9 = vector.load %arg6[%c3, %c0_10, %c0_11] : memref<9x128x128xbf16, #tpu.memory_space<vmem>>, vector<1x128x128xbf16>
    %10 = vector.shape_cast %9 : vector<1x128x128xbf16> to vector<128x128xbf16>
    %cst_12 = arith.constant dense<0.000000e+00> : vector<128x128xf32>
    %11 = tpu.matmul %8, %10, %cst_12 {dimension_numbers = #tpu.dot_dimension_numbers<[1], [0], [0], [1], [0, 0, 1, 1], [], []>} : vector<128x128xbf16>, vector<128x128xbf16>, vector<128x128xf32> -> vector<128x128xf32>
    %12 = arith.addf %5, %11 : vector<128x128xf32>
    %c0_13 = arith.constant 0 : index
    %c1 = arith.constant 1 : index
    %c0_14 = arith.constant 0 : index
    %c0_15 = arith.constant 0 : index
    %13 = vector.load %arg2[%c0_13, %c1, %c0_14, %c0_15] : memref<1x9x16x128xbf16, #tpu.memory_space<vmem>>, vector<1x8x16x128xbf16>
    %14 = vector.shape_cast %13 : vector<1x8x16x128xbf16> to vector<8x16x128xbf16>
    %15 = vector.shape_cast %14 : vector<8x16x128xbf16> to vector<128x128xbf16>
    %c6 = arith.constant 6 : index
    %c0_16 = arith.constant 0 : index
    %c0_17 = arith.constant 0 : index
    %16 = vector.load %arg6[%c6, %c0_16, %c0_17] : memref<9x128x128xbf16, #tpu.memory_space<vmem>>, vector<1x128x128xbf16>
    %17 = vector.shape_cast %16 : vector<1x128x128xbf16> to vector<128x128xbf16>
    %cst_18 = arith.constant dense<0.000000e+00> : vector<128x128xf32>
    %18 = tpu.matmul %15, %17, %cst_18 {dimension_numbers = #tpu.dot_dimension_numbers<[1], [0], [0], [1], [0, 0, 1, 1], [], []>} : vector<128x128xbf16>, vector<128x128xbf16>, vector<128x128xf32> -> vector<128x128xf32>
    %19 = arith.addf %12, %18 : vector<128x128xf32>
    %20 = vector.shape_cast %19 : vector<128x128xf32> to vector<8x16x128xf32>
    %c0_19 = arith.constant 0 : index
    %c0_20 = arith.constant 0 : index
    %c0_21 = arith.constant 0 : index
    %c0_22 = arith.constant 0 : index
    %21 = vector.load %arg3[%c0_19, %c0_20, %c0_21, %c0_22] : memref<1x9x16x128xbf16, #tpu.memory_space<vmem>>, vector<1x8x16x128xbf16>
    %22 = vector.shape_cast %21 : vector<1x8x16x128xbf16> to vector<8x16x128xbf16>
    %23 = vector.shape_cast %22 : vector<8x16x128xbf16> to vector<128x128xbf16>
    %c1_23 = arith.constant 1 : index
    %c0_24 = arith.constant 0 : index
    %c0_25 = arith.constant 0 : index
    %24 = vector.load %arg6[%c1_23, %c0_24, %c0_25] : memref<9x128x128xbf16, #tpu.memory_space<vmem>>, vector<1x128x128xbf16>
    %25 = vector.shape_cast %24 : vector<1x128x128xbf16> to vector<128x128xbf16>
    %cst_26 = arith.constant dense<0.000000e+00> : vector<128x128xf32>
    %26 = tpu.matmul %23, %25, %cst_26 {dimension_numbers = #tpu.dot_dimension_numbers<[1], [0], [0], [1], [0, 0, 1, 1], [], []>} : vector<128x128xbf16>, vector<128x128xbf16>, vector<128x128xf32> -> vector<128x128xf32>
    %c0_27 = arith.constant 0 : index
    %c0_28 = arith.constant 0 : index
    %c0_29 = arith.constant 0 : index
    %c0_30 = arith.constant 0 : index
    %27 = vector.load %arg5[%c0_27, %c0_28, %c0_29, %c0_30] : memref<1x9x16x128xbf16, #tpu.memory_space<vmem>>, vector<1x8x16x128xbf16>
    %28 = vector.shape_cast %27 : vector<1x8x16x128xbf16> to vector<8x16x128xbf16>
    %29 = vector.shape_cast %28 : vector<8x16x128xbf16> to vector<128x128xbf16>
    %c4 = arith.constant 4 : index
    %c0_31 = arith.constant 0 : index
    %c0_32 = arith.constant 0 : index
    %30 = vector.load %arg6[%c4, %c0_31, %c0_32] : memref<9x128x128xbf16, #tpu.memory_space<vmem>>, vector<1x128x128xbf16>
    %31 = vector.shape_cast %30 : vector<1x128x128xbf16> to vector<128x128xbf16>
    %cst_33 = arith.constant dense<0.000000e+00> : vector<128x128xf32>
    %32 = tpu.matmul %29, %31, %cst_33 {dimension_numbers = #tpu.dot_dimension_numbers<[1], [0], [0], [1], [0, 0, 1, 1], [], []>} : vector<128x128xbf16>, vector<128x128xbf16>, vector<128x128xf32> -> vector<128x128xf32>
    %33 = arith.addf %26, %32 : vector<128x128xf32>
    %c0_34 = arith.constant 0 : index
    %c1_35 = arith.constant 1 : index
    %c0_36 = arith.constant 0 : index
    %c0_37 = arith.constant 0 : index
    %34 = vector.load %arg3[%c0_34, %c1_35, %c0_36, %c0_37] : memref<1x9x16x128xbf16, #tpu.memory_space<vmem>>, vector<1x8x16x128xbf16>
    %35 = vector.shape_cast %34 : vector<1x8x16x128xbf16> to vector<8x16x128xbf16>
    %36 = vector.shape_cast %35 : vector<8x16x128xbf16> to vector<128x128xbf16>
    %c7 = arith.constant 7 : index
    %c0_38 = arith.constant 0 : index
    %c0_39 = arith.constant 0 : index
    %37 = vector.load %arg6[%c7, %c0_38, %c0_39] : memref<9x128x128xbf16, #tpu.memory_space<vmem>>, vector<1x128x128xbf16>
    %38 = vector.shape_cast %37 : vector<1x128x128xbf16> to vector<128x128xbf16>
    %cst_40 = arith.constant dense<0.000000e+00> : vector<128x128xf32>
    %39 = tpu.matmul %36, %38, %cst_40 {dimension_numbers = #tpu.dot_dimension_numbers<[1], [0], [0], [1], [0, 0, 1, 1], [], []>} : vector<128x128xbf16>, vector<128x128xbf16>, vector<128x128xf32> -> vector<128x128xf32>
    %40 = arith.addf %33, %39 : vector<128x128xf32>
    %41 = vector.shape_cast %40 : vector<128x128xf32> to vector<8x16x128xf32>
    %c0_41 = arith.constant 0 : index
    %c0_42 = arith.constant 0 : index
    %c0_43 = arith.constant 0 : index
    %c0_44 = arith.constant 0 : index
    %42 = vector.load %arg2[%c0_41, %c0_42, %c0_43, %c0_44] : memref<1x9x16x128xbf16, #tpu.memory_space<vmem>>, vector<1x8x16x128xbf16>
    %43 = vector.shape_cast %42 : vector<1x8x16x128xbf16> to vector<8x16x128xbf16>
    %44 = vector.shape_cast %43 : vector<8x16x128xbf16> to vector<128x128xbf16>
    %c2 = arith.constant 2 : index
    %c0_45 = arith.constant 0 : index
    %c0_46 = arith.constant 0 : index
    %45 = vector.load %arg6[%c2, %c0_45, %c0_46] : memref<9x128x128xbf16, #tpu.memory_space<vmem>>, vector<1x128x128xbf16>
    %46 = vector.shape_cast %45 : vector<1x128x128xbf16> to vector<128x128xbf16>
    %cst_47 = arith.constant dense<0.000000e+00> : vector<128x128xf32>
    %47 = tpu.matmul %44, %46, %cst_47 {dimension_numbers = #tpu.dot_dimension_numbers<[1], [0], [0], [1], [0, 0, 1, 1], [], []>} : vector<128x128xbf16>, vector<128x128xbf16>, vector<128x128xf32> -> vector<128x128xf32>
    %c0_48 = arith.constant 0 : index
    %c0_49 = arith.constant 0 : index
    %c0_50 = arith.constant 0 : index
    %c0_51 = arith.constant 0 : index
    %48 = vector.load %arg4[%c0_48, %c0_49, %c0_50, %c0_51] : memref<1x9x16x128xbf16, #tpu.memory_space<vmem>>, vector<1x8x16x128xbf16>
    %49 = vector.shape_cast %48 : vector<1x8x16x128xbf16> to vector<8x16x128xbf16>
    %50 = vector.shape_cast %49 : vector<8x16x128xbf16> to vector<128x128xbf16>
    %c5 = arith.constant 5 : index
    %c0_52 = arith.constant 0 : index
    %c0_53 = arith.constant 0 : index
    %51 = vector.load %arg6[%c5, %c0_52, %c0_53] : memref<9x128x128xbf16, #tpu.memory_space<vmem>>, vector<1x128x128xbf16>
    %52 = vector.shape_cast %51 : vector<1x128x128xbf16> to vector<128x128xbf16>
    %cst_54 = arith.constant dense<0.000000e+00> : vector<128x128xf32>
    %53 = tpu.matmul %50, %52, %cst_54 {dimension_numbers = #tpu.dot_dimension_numbers<[1], [0], [0], [1], [0, 0, 1, 1], [], []>} : vector<128x128xbf16>, vector<128x128xbf16>, vector<128x128xf32> -> vector<128x128xf32>
    %54 = arith.addf %47, %53 : vector<128x128xf32>
    %c0_55 = arith.constant 0 : index
    %c1_56 = arith.constant 1 : index
    %c0_57 = arith.constant 0 : index
    %c0_58 = arith.constant 0 : index
    %55 = vector.load %arg2[%c0_55, %c1_56, %c0_57, %c0_58] : memref<1x9x16x128xbf16, #tpu.memory_space<vmem>>, vector<1x8x16x128xbf16>
    %56 = vector.shape_cast %55 : vector<1x8x16x128xbf16> to vector<8x16x128xbf16>
    %57 = vector.shape_cast %56 : vector<8x16x128xbf16> to vector<128x128xbf16>
    %c8 = arith.constant 8 : index
    %c0_59 = arith.constant 0 : index
    %c0_60 = arith.constant 0 : index
    %58 = vector.load %arg6[%c8, %c0_59, %c0_60] : memref<9x128x128xbf16, #tpu.memory_space<vmem>>, vector<1x128x128xbf16>
    %59 = vector.shape_cast %58 : vector<1x128x128xbf16> to vector<128x128xbf16>
    %cst_61 = arith.constant dense<0.000000e+00> : vector<128x128xf32>
    %60 = tpu.matmul %57, %59, %cst_61 {dimension_numbers = #tpu.dot_dimension_numbers<[1], [0], [0], [1], [0, 0, 1, 1], [], []>} : vector<128x128xbf16>, vector<128x128xbf16>, vector<128x128xf32> -> vector<128x128xf32>
    %61 = arith.addf %54, %60 : vector<128x128xf32>
    %62 = vector.shape_cast %61 : vector<128x128xf32> to vector<8x16x128xf32>
    %63 = vector.extract_strided_slice %20 {offsets = [0, 0, 0], sizes = [8, 8, 128], strides = [1, 1, 1]} : vector<8x16x128xf32> to vector<8x8x128xf32>
    %64 = vector.extract_strided_slice %41 {offsets = [0, 0, 0], sizes = [8, 8, 128], strides = [1, 1, 1]} : vector<8x16x128xf32> to vector<8x8x128xf32>
    %65 = arith.addf %63, %64 : vector<8x8x128xf32>
    %66 = vector.extract_strided_slice %62 {offsets = [0, 1, 0], sizes = [8, 8, 128], strides = [1, 1, 1]} : vector<8x16x128xf32> to vector<8x8x128xf32>
    %67 = arith.addf %65, %66 : vector<8x8x128xf32>
    %c0_62 = arith.constant 0 : index
    %c0_63 = arith.constant 0 : index
    %68 = vector.load %arg7[%c0_62, %c0_63] : memref<1x128xf32, #tpu.memory_space<vmem>>, vector<1x128xf32>
    %69 = vector.shape_cast %68 : vector<1x128xf32> to vector<1x1x128xf32>
    %70 = vector.broadcast %69 : vector<1x1x128xf32> to vector<8x8x128xf32>
    %71 = arith.addf %67, %70 : vector<8x8x128xf32>
    %cst_64 = arith.constant 0.000000e+00 : f32
    %72 = vector.broadcast %cst_64 : f32 to vector<8x8x128xf32>
    %73 = arith.maximumf %71, %72 : vector<8x8x128xf32>
    %cst_65 = arith.constant 0.000000e+00 : bf16
    %74 = vector.broadcast %cst_65 : bf16 to vector<1x10x16x128xbf16>
    %c0_66 = arith.constant 0 : index
    %c0_67 = arith.constant 0 : index
    %c0_68 = arith.constant 0 : index
    %c0_69 = arith.constant 0 : index
    %75 = vector.load %arg8[%c0_66, %c0_67, %c0_68, %c0_69] : memref<1x10x16x128xbf16, #tpu.memory_space<vmem>>, vector<1x10x16x128xbf16>
    tpu.vector_store %arg8[%c0_66, %c0_67, %c0_68, %c0_69], %74 {strides = array<i32>} : memref<1x10x16x128xbf16, #tpu.memory_space<vmem>>, vector<1x10x16x128xbf16>,
    %76 = arith.truncf %73 : vector<8x8x128xf32> to vector<8x8x128xbf16>
    %c0_70 = arith.constant 0 : index
    %c1_71 = arith.constant 1 : index
    %c1_72 = arith.constant 1 : index
    %c0_73 = arith.constant 0 : index
    %77 = vector.load %arg8[%c0_70, %c1_71, %c1_72, %c0_73] : memref<1x10x16x128xbf16, #tpu.memory_space<vmem>>, vector<1x8x8x128xbf16>
    %78 = vector.shape_cast %77 : vector<1x8x8x128xbf16> to vector<8x8x128xbf16>
    %79 = vector.shape_cast %76 : vector<8x8x128xbf16> to vector<1x8x8x128xbf16>
    tpu.vector_store %arg8[%c0_70, %c1_71, %c1_72, %c0_73], %79 {strides = array<i32>} : memref<1x10x16x128xbf16, #tpu.memory_space<vmem>>, vector<1x8x8x128xbf16>,
    return
  }
  func.func @transform_0(%arg0: i32, %arg1: i32) -> (i32, i32, i32, i32) {
    %c0_i32 = arith.constant 0 : i32
    %c0_i32_0 = arith.constant 0 : i32
    %c0_i32_1 = arith.constant 0 : i32
    %c0_i32_2 = arith.constant 0 : i32
    return %arg1, %c0_i32, %c0_i32_0, %c0_i32_1 : i32, i32, i32, i32
  }
  func.func @transform_1(%arg0: i32, %arg1: i32) -> (i32, i32, i32, i32) {
    %c0_i32 = arith.constant 0 : i32
    %c0_i32_0 = arith.constant 0 : i32
    %c0_i32_1 = arith.constant 0 : i32
    %c0_i32_2 = arith.constant 0 : i32
    return %arg1, %c0_i32, %c0_i32_0, %c0_i32_1 : i32, i32, i32, i32
  }
  func.func @transform_2(%arg0: i32, %arg1: i32) -> (i32, i32, i32, i32) {
    %c0_i32 = arith.constant 0 : i32
    %c0_i32_0 = arith.constant 0 : i32
    %c0_i32_1 = arith.constant 0 : i32
    %c0_i32_2 = arith.constant 0 : i32
    return %arg1, %c0_i32, %c0_i32_0, %c0_i32_1 : i32, i32, i32, i32
  }
  func.func @transform_3(%arg0: i32, %arg1: i32) -> (i32, i32, i32, i32) {
    %c0_i32 = arith.constant 0 : i32
    %c0_i32_0 = arith.constant 0 : i32
    %c0_i32_1 = arith.constant 0 : i32
    %c0_i32_2 = arith.constant 0 : i32
    return %arg1, %c0_i32, %c0_i32_0, %c0_i32_1 : i32, i32, i32, i32
  }
  func.func @transform_4(%arg0: i32, %arg1: i32) -> (i32, i32, i32) {
    %c0_i32 = arith.constant 0 : i32
    %c0_i32_0 = arith.constant 0 : i32
    %c0_i32_1 = arith.constant 0 : i32
    return %c0_i32, %c0_i32_0, %arg0 : i32, i32, i32
  }
  func.func @transform_5(%arg0: i32, %arg1: i32) -> (i32, i32) {
    %c0_i32 = arith.constant 0 : i32
    %c0_i32_0 = arith.constant 0 : i32
    return %c0_i32, %arg0 : i32, i32
  }
  func.func @transform_6(%arg0: i32, %arg1: i32) -> (i32, i32, i32, i32) {
    %c0_i32 = arith.constant 0 : i32
    %c0_i32_0 = arith.constant 0 : i32
    %c0_i32_1 = arith.constant 0 : i32
    return %arg1, %c0_i32, %c0_i32_0, %arg0 : i32, i32, i32, i32
  }
}

</mosaic_0001>

<llo_original>
// kernel: tpu_custom_call.1
$region0: #{tpu_custom_call.1}
  #allocation0 [shape = 'u32[]', space=smem, size = 0x4, offset = 0x4, fixed_abs, tag = 'smem constant byte address 0x4 - core index']
  #allocation1 [shape = 'u32[144,128]{1,0:T(1,128)}', space=vmem, size = 0x12000, scoped, tag = 'internal scratch']
  %s0 = inlined_call_operand.hbm [shape: bf16[2,9,16,128], index: 0, kind: input, shape index: {}]
  %s1 = inlined_call_operand.hbm [shape: bf16[2,9,16,128], index: 1, kind: input, shape index: {}]
  %s2 = inlined_call_operand.hbm [shape: bf16[2,9,16,128], index: 2, kind: input, shape index: {}]
  %s3 = inlined_call_operand.hbm [shape: bf16[2,9,16,128], index: 3, kind: input, shape index: {}]
  %s4 = inlined_call_operand.hbm [shape: bf16[9,128,128], index: 4, kind: input, shape index: {}]
  %s5 = inlined_call_operand.vmem [shape: f32[1,128], index: 5, kind: input, shape index: {}]
  %s6 = inlined_call_operand.hbm [shape: bf16[2,10,16,128], index: 6, kind: output, shape index: {}]
  %s7 = sld [smem:[#allocation0]]
  $region77: #{tpu_custom_call.1} parent=0
    _
  %s9 = ssub.s32 1, %s7
  %s10 = scalar_select 0, %s9, %s7
  $region1: #{tpu_custom_call.1} parent=0
    #allocation2 [shape = 'u8[73728]{0}', space=vmem, size = 0x12000, scoped, tag = 'input window, operand 0']
    #allocation3 [shape = 's32[2]{0}', space=sflag, size = 0x8, scoped, tag = 'scoped memory for tpu_custom_call.1']
    #allocation4 [shape = 's32[2]{0}', space=sflag, size = 0x8, scoped, tag = 'scoped memory for tpu_custom_call.1']
    #allocation5 [shape = 'u8[73728]{0}', space=vmem, size = 0x12000, scoped, tag = 'input window, operand 1']
    #allocation6 [shape = 's32[2]{0}', space=sflag, size = 0x8, scoped, tag = 'scoped memory for tpu_custom_call.1']
    #allocation7 [shape = 'u8[73728]{0}', space=vmem, size = 0x12000, scoped, tag = 'input window, operand 2']
    #allocation8 [shape = 'u8[73728]{0}', space=vmem, size = 0x12000, scoped, tag = 'input window, operand 3']
    #allocation9 [shape = 's32[2]{0}', space=sflag, size = 0x8, scoped, tag = 'scoped memory for tpu_custom_call.1']
    #allocation10 [shape = 'u8[294912]{0}', space=vmem, size = 0x48000, scoped, tag = 'input window, operand 4, single buffered']
    #allocation11 [shape = 'u8[81920]{0}', space=vmem, size = 0x14000, scoped, tag = 'output window, operand 0']
    %11 = vsyncpa [#allocation3], 0
    %s12 = scalar_lea.sflag [#allocation3], 1
    %13 = vsyncpa %s12, 0
    %14 = vsyncpa [#allocation6], 0
    %s15 = scalar_lea.sflag [#allocation6], 1
    %16 = vsyncpa %s15, 0
    %17 = vsyncpa [#allocation9], 0
    %s18 = scalar_lea.sflag [#allocation9], 1
    %19 = vsyncpa %s18, 0
    %20 = vsyncpa [#allocation4], 0
    %s21 = scalar_lea.sflag [#allocation4], 1
    %22 = vsyncpa %s21, 0
    loop: start=0, step=1, limit=4
    $region2: #{tpu_custom_call.1} parent=1 // loop_pre_header
      _
    $region3: #{tpu_custom_call.1} parent=1 // loop_header
      %s24 = sphi 0, %s28
      %p25 = scmp.ge.s32.totalorder %s24, 4
      %s31 = sphi 0, %s43
      %s32 = sphi 0, %s39
      %s33 = sphi 0, %s31
      %s34 = sphi 0, %s32
      %s35 = sphi 0, %s33
      %s36 = sphi 0, %s34
      %s46 = sphi 0, %s48
      %s49 = sphi 0, %s46
      %s50 = sphi 0, %s49
      %s66 = sphi 0, %s50
      %s72 = sphi 0, %s74
      %s75 = sphi 0, %s72
      %s76 = sphi 0, %s75
      %s92 = sphi 0, %s76
      %s98 = sphi 0, %s100
      %s101 = sphi 0, %s98
      %s102 = sphi 0, %s101
      %s118 = sphi 0, %s102
      %s124 = sphi 0, %s126
      %s127 = sphi 0, %s124
      %s128 = sphi 0, %s127
      %s144 = sphi 0, %s128
      %s150 = sphi 0, %s152
      %s153 = sphi 0, %s150
      %s154 = sphi 0, %s153
      %s170 = sphi 0, %s154
      %s176 = sphi 0, %s178
      %s179 = sphi 0, %s176
      %s180 = sphi 0, %s179
      %s196 = sphi 0, %s180
      %s204 = sphi 0, %s206
      %s207 = sphi 0, %s204
      %s208 = sphi 0, %s207
      %s224 = sphi 0, %s208
    $region4: #{tpu_custom_call.1} parent=1 // loop_header_branch
      %27 = sbr.rel (%p25) target = $region8
    $region5: #{tpu_custom_call.1} parent=1 // loop_body
      %s29 = ssub.s32 %s24, 1
      %s30 = ssub.s32 %s24, 2
      %s37 = sadd.s32 1, %s32
      %p38 = scmp.ge.s32.totalorder %s37, 2
      %s39 = scalar_select %p38, 0, %s37
      %s40 = sadd.s32 1, %s31
      %s41 = scalar_select %p38, %s40, %s31
      %p42 = scmp.ge.s32.totalorder %s41, 1
      %s43 = scalar_select %p42, 0, %s41
      %s44 = ssub.s32 %s32, %s39
      %p45 = scmp.eq.s32.totalorder %s44, 0
      %s47 = sadd.s32 %s46, 1
      %s48 = scalar_select %p45, %s46, %s47
      %p51 = pneg %p45
      %p52 = scmp.eq.s32.totalorder %s24, 1
      %p53 = por %p51, %p52
      %p54 = scmp.ne.s32.totalorder %s46, %s49
      %p55 = scmp.eq.s32.totalorder %s24, 0
      %p56 = por %p54, %p55
      %p57 = scmp.ne.s32.totalorder %s46, %s49
      %p58 = scmp.eq.s32.totalorder %s29, 1
      %p59 = por %p57, %p58
      %p60 = scmp.ne.s32.totalorder %s49, %s50
      %p61 = scmp.eq.s32.totalorder %s29, 0
      %p62 = por %p60, %p61
      %p63 = scmp.ne.s32.totalorder %s49, %s50
      %p64 = scmp.eq.s32.totalorder %s30, 1
      %p65 = por %p63, %p64
      %p67 = scmp.ne.s32.totalorder %s50, %s66
      %p68 = scmp.eq.s32.totalorder %s30, 0
      %p69 = por %p67, %p68
      %s70 = ssub.s32 %s32, %s39
      %p71 = scmp.eq.s32.totalorder %s70, 0
      %s73 = sadd.s32 %s72, 1
      %s74 = scalar_select %p71, %s72, %s73
      %p77 = pneg %p71
      %p78 = scmp.eq.s32.totalorder %s24, 1
      %p79 = por %p77, %p78
      %p80 = scmp.ne.s32.totalorder %s72, %s75
      %p81 = scmp.eq.s32.totalorder %s24, 0
      %p82 = por %p80, %p81
      %p83 = scmp.ne.s32.totalorder %s72, %s75
      %p84 = scmp.eq.s32.totalorder %s29, 1
      %p85 = por %p83, %p84
      %p86 = scmp.ne.s32.totalorder %s75, %s76
      %p87 = scmp.eq.s32.totalorder %s29, 0
      %p88 = por %p86, %p87
      %p89 = scmp.ne.s32.totalorder %s75, %s76
      %p90 = scmp.eq.s32.totalorder %s30, 1
      %p91 = por %p89, %p90
      %p93 = scmp.ne.s32.totalorder %s76, %s92
      %p94 = scmp.eq.s32.totalorder %s30, 0
      %p95 = por %p93, %p94
      %s96 = ssub.s32 %s32, %s39
      %p97 = scmp.eq.s32.totalorder %s96, 0
      %s99 = sadd.s32 %s98, 1
      %s100 = scalar_select %p97, %s98, %s99
      %p103 = pneg %p97
      %p104 = scmp.eq.s32.totalorder %s24, 1
      %p105 = por %p103, %p104
      %p106 = scmp.ne.s32.totalorder %s98, %s101
      %p107 = scmp.eq.s32.totalorder %s24, 0
      %p108 = por %p106, %p107
      %p109 = scmp.ne.s32.totalorder %s98, %s101
      %p110 = scmp.eq.s32.totalorder %s29, 1
      %p111 = por %p109, %p110
      %p112 = scmp.ne.s32.totalorder %s101, %s102
      %p113 = scmp.eq.s32.totalorder %s29, 0
      %p114 = por %p112, %p113
      %p115 = scmp.ne.s32.totalorder %s101, %s102
      %p116 = scmp.eq.s32.totalorder %s30, 1
      %p117 = por %p115, %p116
      %p119 = scmp.ne.s32.totalorder %s102, %s118
      %p120 = scmp.eq.s32.totalorder %s30, 0
      %p121 = por %p119, %p120
      %s122 = ssub.s32 %s32, %s39
      %p123 = scmp.eq.s32.totalorder %s122, 0
      %s125 = sadd.s32 %s124, 1
      %s126 = scalar_select %p123, %s124, %s125
      %p129 = pneg %p123
      %p130 = scmp.eq.s32.totalorder %s24, 1
      %p131 = por %p129, %p130
      %p132 = scmp.ne.s32.totalorder %s124, %s127
      %p133 = scmp.eq.s32.totalorder %s24, 0
      %p134 = por %p132, %p133
      %p135 = scmp.ne.s32.totalorder %s124, %s127
      %p136 = scmp.eq.s32.totalorder %s29, 1
      %p137 = por %p135, %p136
      %p138 = scmp.ne.s32.totalorder %s127, %s128
      %p139 = scmp.eq.s32.totalorder %s29, 0
      %p140 = por %p138, %p139
      %p141 = scmp.ne.s32.totalorder %s127, %s128
      %p142 = scmp.eq.s32.totalorder %s30, 1
      %p143 = por %p141, %p142
      %p145 = scmp.ne.s32.totalorder %s128, %s144
      %p146 = scmp.eq.s32.totalorder %s30, 0
      %p147 = por %p145, %p146
      %s148 = ssub.s32 %s31, %s43
      %p149 = scmp.eq.s32.totalorder %s148, 0
      %s151 = sadd.s32 %s150, 1
      %s152 = scalar_select %p149, %s150, %s151
      %p155 = pneg %p149
      %p156 = scmp.eq.s32.totalorder %s24, 1
      %p157 = por %p155, %p156
      %p158 = scmp.ne.s32.totalorder %s150, %s153
      %p159 = scmp.eq.s32.totalorder %s24, 0
      %p160 = por %p158, %p159
      %p161 = scmp.ne.s32.totalorder %s150, %s153
      %p162 = scmp.eq.s32.totalorder %s29, 1
      %p163 = por %p161, %p162
      %p164 = scmp.ne.s32.totalorder %s153, %s154
      %p165 = scmp.eq.s32.totalorder %s29, 0
      %p166 = por %p164, %p165
      %p167 = scmp.ne.s32.totalorder %s153, %s154
      %p168 = scmp.eq.s32.totalorder %s30, 1
      %p169 = por %p167, %p168
      %p171 = scmp.ne.s32.totalorder %s154, %s170
      %p172 = scmp.eq.s32.totalorder %s30, 0
      %p173 = por %p171, %p172
      %s174 = ssub.s32 %s31, %s43
      %p175 = scmp.eq.s32.totalorder %s174, 0
      %s177 = sadd.s32 %s176, 1
      %s178 = scalar_select %p175, %s176, %s177
      %p181 = pneg %p175
      %p182 = scmp.eq.s32.totalorder %s24, 1
      %p183 = por %p181, %p182
      %p184 = scmp.ne.s32.totalorder %s176, %s179
      %p185 = scmp.eq.s32.totalorder %s24, 0
      %p186 = por %p184, %p185
      %p187 = scmp.ne.s32.totalorder %s176, %s179
      %p188 = scmp.eq.s32.totalorder %s29, 1
      %p189 = por %p187, %p188
      %p190 = scmp.ne.s32.totalorder %s179, %s180
      %p191 = scmp.eq.s32.totalorder %s29, 0
      %p192 = por %p190, %p191
      %p193 = scmp.ne.s32.totalorder %s179, %s180
      %p194 = scmp.eq.s32.totalorder %s30, 1
      %p195 = por %p193, %p194
      %p197 = scmp.ne.s32.totalorder %s180, %s196
      %p198 = scmp.eq.s32.totalorder %s30, 0
      %p199 = por %p197, %p198
      %s200 = ssub.s32 %s32, %s39
      %s201 = ssub.s32 %s31, %s43
      %s202 = sor.u32 %s200, %s201
      %p203 = scmp.eq.s32.totalorder %s202, 0
      %s205 = sadd.s32 %s204, 1
      %s206 = scalar_select %p203, %s204, %s205
      %p209 = pneg %p203
      %p210 = scmp.eq.s32.totalorder %s24, 1
      %p211 = por %p209, %p210
      %p212 = scmp.ne.s32.totalorder %s204, %s207
      %p213 = scmp.eq.s32.totalorder %s24, 0
      %p214 = por %p212, %p213
      %p215 = scmp.ne.s32.totalorder %s204, %s207
      %p216 = scmp.eq.s32.totalorder %s29, 1
      %p217 = por %p215, %p216
      %p218 = scmp.ne.s32.totalorder %s207, %s208
      %p219 = scmp.eq.s32.totalorder %s29, 0
      %p220 = por %p218, %p219
      %p221 = scmp.ne.s32.totalorder %s207, %s208
      %p222 = scmp.eq.s32.totalorder %s30, 1
      %p223 = por %p221, %p222
      %p225 = scmp.ne.s32.totalorder %s208, %s224
      %p226 = scmp.eq.s32.totalorder %s30, 0
      %p227 = por %p225, %p226
      %p228 = scmp.le.s32.totalorder 1, %s24
      %p229 = scmp.lt.s32.totalorder %s24, 3
      %p230 = pnand %p228, %p229
      %p231 = pneg %p230
      // Predicated region
      $region9: #{tpu_custom_call.1} parent=5 // pred_check
        _
      $region10: #{tpu_custom_call.1} parent=5 // pred_check_branch
        %233 = sbr.rel (%p230) target = $region12
      $region11: #{tpu_custom_call.1} parent=5 // pred_region
        %s234 = ssub.s32 %s24, 1
        // Predicated region
        $region13: #{tpu_custom_call.1} parent=11 // pred_check
          %p235 = pneg %p166
        $region14: #{tpu_custom_call.1} parent=11 // pred_check_branch
          %237 = sbr.rel (%p235) target = $region16
        $region15: #{tpu_custom_call.1} parent=11 // pred_region
          %s239 = ssub.s32 9216, 9216
          %240 = vsyncadd [#allocation9], %s239
          %s241 = smul.addr %s33, 64
          %s242 = scalar_lea.hbm %s4, %s241
          %s243 = sshll.u32 [#allocation10], 4
          %s244 = int_to_ptr.vmem [resolvable:$true] %s243
          %249 = dma.hbm_to_vmem [thread:$0]  %s242, 9216, %s244, [#allocation9], 64, 64, 4
        $region16: #{tpu_custom_call.1} parent=11 // pred_fallthru
          _
        // Predicated region
        $region17: #{tpu_custom_call.1} parent=11 // pred_check
          %p250 = pneg %p192
        $region18: #{tpu_custom_call.1} parent=11 // pred_check_branch
          %252 = sbr.rel (%p250) target = $region20
        $region19: #{tpu_custom_call.1} parent=11 // pred_region
          %p253 = scmp.lt.s32.totalorder %s33, 0
          %s254 = scalar_select %p253, %s33, 0
          %s255 = scalar_lea.vmem %s5, %s254
        $region20: #{tpu_custom_call.1} parent=11 // pred_fallthru
          _
      $region12: #{tpu_custom_call.1} parent=5 // pred_fallthru
        _
      %p256 = scmp.lt.s32.totalorder %s24, 2
      // Predicated region
      $region21: #{tpu_custom_call.1} parent=5 // pred_check
        %p257 = pneg %p256
      $region22: #{tpu_custom_call.1} parent=5 // pred_check_branch
        %259 = sbr.rel (%p257) target = $region24
      $region23: #{tpu_custom_call.1} parent=5 // pred_region
        // Predicated region
        $region25: #{tpu_custom_call.1} parent=23 // pred_check
          %p260 = pneg %p56
        $region26: #{tpu_custom_call.1} parent=23 // pred_check_branch
          %262 = sbr.rel (%p260) target = $region28
        $region27: #{tpu_custom_call.1} parent=23 // pred_region
          %s263 = sand.u32 %s46, 1
          %s264 = scalar_lea.sflag [#allocation3], %s263
          %s265 = sand.u32 %s46, 1
          %s266 = smul.addr %s265, 72
          %s267 = scalar_lea.vmem [#allocation2], %s266
          %s269 = ssub.s32 1152, 1152
          %270 = vsyncadd %s264, %s269
          %s271 = smul.addr %s32, 18
          %s272 = smul.addr %s271, 64
          %s273 = scalar_lea.hbm %s0, %s272
          %s274 = sshll.u32 %s267, 4
          %s275 = int_to_ptr.vmem [resolvable:$true] %s274
          %280 = dma.hbm_to_vmem [thread:$0]  %s273, 1152, %s275, %s264, 64, 64, 4
        $region28: #{tpu_custom_call.1} parent=23 // pred_fallthru
          _
        // Predicated region
        $region29: #{tpu_custom_call.1} parent=23 // pred_check
          %p281 = pneg %p82
        $region30: #{tpu_custom_call.1} parent=23 // pred_check_branch
          %283 = sbr.rel (%p281) target = $region32
        $region31: #{tpu_custom_call.1} parent=23 // pred_region
          %s284 = sand.u32 %s24, 1
          %s285 = scalar_lea.sflag [#allocation6], %s284
          %s286 = sand.u32 %s72, 1
          %s287 = smul.addr %s286, 72
          %s288 = scalar_lea.vmem [#allocation5], %s287
          %s290 = ssub.s32 1152, 1152
          %291 = vsyncadd %s285, %s290
          %s292 = smul.addr %s32, 18
          %s293 = smul.addr %s292, 64
          %s294 = scalar_lea.hbm %s1, %s293
          %s295 = sshll.u32 %s288, 4
          %s296 = int_to_ptr.vmem [resolvable:$true] %s295
          %301 = dma.hbm_to_vmem [thread:$0]  %s294, 1152, %s296, %s285, 64, 64, 4
        $region32: #{tpu_custom_call.1} parent=23 // pred_fallthru
          _
        // Predicated region
        $region33: #{tpu_custom_call.1} parent=23 // pred_check
          %p302 = pneg %p108
        $region34: #{tpu_custom_call.1} parent=23 // pred_check_branch
          %304 = sbr.rel (%p302) target = $region36
        $region35: #{tpu_custom_call.1} parent=23 // pred_region
          %s305 = sand.u32 %s24, 1
          %s306 = scalar_lea.sflag [#allocation6], %s305
          %s307 = sand.u32 %s98, 1
          %s308 = smul.addr %s307, 72
          %s309 = scalar_lea.vmem [#allocation7], %s308
          %s311 = ssub.s32 1152, 1152
          %312 = vsyncadd %s306, %s311
          %s313 = smul.addr %s32, 18
          %s314 = smul.addr %s313, 64
          %s315 = scalar_lea.hbm %s2, %s314
          %s316 = sshll.u32 %s309, 4
          %s317 = int_to_ptr.vmem [resolvable:$true] %s316
          %322 = dma.hbm_to_vmem [thread:$0]  %s315, 1152, %s317, %s306, 64, 64, 4
        $region36: #{tpu_custom_call.1} parent=23 // pred_fallthru
          _
        // Predicated region
        $region37: #{tpu_custom_call.1} parent=23 // pred_check
          %p323 = pneg %p134
        $region38: #{tpu_custom_call.1} parent=23 // pred_check_branch
          %325 = sbr.rel (%p323) target = $region40
        $region39: #{tpu_custom_call.1} parent=23 // pred_region
          %s326 = sand.u32 %s24, 1
          %s327 = scalar_lea.sflag [#allocation9], %s326
          %s328 = sand.u32 %s124, 1
          %s329 = smul.addr %s328, 72
          %s330 = scalar_lea.vmem [#allocation8], %s329
          %s332 = ssub.s32 1152, 1152
          %333 = vsyncadd %s327, %s332
          %s334 = smul.addr %s32, 18
          %s335 = smul.addr %s334, 64
          %s336 = scalar_lea.hbm %s3, %s335
          %s337 = sshll.u32 %s330, 4
          %s338 = int_to_ptr.vmem [resolvable:$true] %s337
          %343 = dma.hbm_to_vmem [thread:$0]  %s336, 1152, %s338, %s327, 64, 64, 4
        $region40: #{tpu_custom_call.1} parent=23 // pred_fallthru
          _
      $region24: #{tpu_custom_call.1} parent=5 // pred_fallthru
        _
      %p344 = scmp.le.s32.totalorder 1, %s24
      %p345 = scmp.lt.s32.totalorder %s24, 3
      %p346 = pnand %p344, %p345
      %p347 = pneg %p346
      // Predicated region
      $region41: #{tpu_custom_call.1} parent=5 // pred_check
        _
      $region42: #{tpu_custom_call.1} parent=5 // pred_check_branch
        %349 = sbr.rel (%p346) target = $region44
      $region43: #{tpu_custom_call.1} parent=5 // pred_region
        %s350 = ssub.s32 %s24, 1
        %s351 = sand.u32 %s49, 1
        %s352 = scalar_lea.sflag [#allocation3], %s351
        %s353 = sand.u32 %s49, 1
        %s354 = smul.addr %s353, 72
        %s355 = scalar_lea.vmem [#allocation2], %s354
        // Predicated region
        $region45: #{tpu_custom_call.1} parent=43 // pred_check
          %p356 = pneg %p62
        $region46: #{tpu_custom_call.1} parent=43 // pred_check_branch
          %358 = sbr.rel (%p356) target = $region48
        $region47: #{tpu_custom_call.1} parent=43 // pred_region
          %359 = dma.done %s352, 1152
        $region48: #{tpu_custom_call.1} parent=43 // pred_fallthru
          _
        %s360 = sand.u32 %s29, 1
        %s361 = scalar_lea.sflag [#allocation6], %s360
        %s362 = sand.u32 %s75, 1
        %s363 = smul.addr %s362, 72
        %s364 = scalar_lea.vmem [#allocation5], %s363
        // Predicated region
        $region49: #{tpu_custom_call.1} parent=43 // pred_check
          %p365 = pneg %p88
        $region50: #{tpu_custom_call.1} parent=43 // pred_check_branch
          %367 = sbr.rel (%p365) target = $region52
        $region51: #{tpu_custom_call.1} parent=43 // pred_region
          %368 = dma.done %s361, 1152
        $region52: #{tpu_custom_call.1} parent=43 // pred_fallthru
          _
        %s369 = sand.u32 %s29, 1
        %s370 = scalar_lea.sflag [#allocation6], %s369
        %s371 = sand.u32 %s101, 1
        %s372 = smul.addr %s371, 72
        %s373 = scalar_lea.vmem [#allocation7], %s372
        // Predicated region
        $region53: #{tpu_custom_call.1} parent=43 // pred_check
          %p374 = pneg %p114
        $region54: #{tpu_custom_call.1} parent=43 // pred_check_branch
          %376 = sbr.rel (%p374) target = $region56
        $region55: #{tpu_custom_call.1} parent=43 // pred_region
          %377 = dma.done %s370, 1152
        $region56: #{tpu_custom_call.1} parent=43 // pred_fallthru
          _
        %s378 = sand.u32 %s29, 1
        %s379 = scalar_lea.sflag [#allocation9], %s378
        %s380 = sand.u32 %s127, 1
        %s381 = smul.addr %s380, 72
        %s382 = scalar_lea.vmem [#allocation8], %s381
        // Predicated region
        $region57: #{tpu_custom_call.1} parent=43 // pred_check
          %p383 = pneg %p140
        $region58: #{tpu_custom_call.1} parent=43 // pred_check_branch
          %385 = sbr.rel (%p383) target = $region60
        $region59: #{tpu_custom_call.1} parent=43 // pred_region
          %386 = dma.done %s379, 1152
        $region60: #{tpu_custom_call.1} parent=43 // pred_fallthru
          _
        // Predicated region
        $region61: #{tpu_custom_call.1} parent=43 // pred_check
          %p387 = pneg %p166
        $region62: #{tpu_custom_call.1} parent=43 // pred_check_branch
          %389 = sbr.rel (%p387) target = $region64
        $region63: #{tpu_custom_call.1} parent=43 // pred_region
          %390 = dma.done [#allocation9], 9216
        $region64: #{tpu_custom_call.1} parent=43 // pred_fallthru
          _
        %s391 = sand.u32 %s49, 1
        %s392 = scalar_lea.sflag [#allocation3], %s391
        %s393 = sand.u32 %s49, 1
        %s394 = smul.addr %s393, 72
        %s395 = scalar_lea.vmem [#allocation2], %s394
        %p396 = pneg %p62
        %p397 = pneg %p59
        %s398 = sand.u32 %s29, 1
        %s399 = scalar_lea.sflag [#allocation6], %s398
        %s400 = sand.u32 %s75, 1
        %s401 = smul.addr %s400, 72
        %s402 = scalar_lea.vmem [#allocation5], %s401
        %p403 = pneg %p88
        %p404 = pneg %p85
        %s405 = sand.u32 %s29, 1
        %s406 = scalar_lea.sflag [#allocation6], %s405
        %s407 = sand.u32 %s101, 1
        %s408 = smul.addr %s407, 72
        %s409 = scalar_lea.vmem [#allocation7], %s408
        %p410 = pneg %p114
        %p411 = pneg %p111
        %s412 = sand.u32 %s29, 1
        %s413 = scalar_lea.sflag [#allocation9], %s412
        %s414 = sand.u32 %s127, 1
        %s415 = smul.addr %s414, 72
        %s416 = scalar_lea.vmem [#allocation8], %s415
        %p417 = pneg %p140
        %p418 = pneg %p137
        %p419 = pneg %p166
        %p420 = pneg %p163
        %p421 = scmp.lt.s32.totalorder %s33, 0
        %s422 = scalar_select %p421, %s33, 0
        %s423 = scalar_lea.vmem %s5, %s422
        %p424 = pneg %p192
        %p425 = pneg %p189
        %p426 = pneg %p220
        %p427 = pneg %p217
        %s428 = sand.u32 %s207, 1
        %s429 = scalar_lea.sflag [#allocation4], %s428
        %s430 = sand.u32 %s207, 1
        %s431 = smul.addr %s430, 80
        %s432 = scalar_lea.vmem [#allocation11], %s431
        %p433 = scmp.lt.s32.totalorder %s33, 0
        %s434 = scalar_select %p433, %s33, 0
        %s435 = scalar_lea.vmem %s5, %s434
        %v437 = vld [vmem:[%s355] sm:$0xf]
        %v438 = vld [vmem:[%s355 + $0x4] sm:$0xf]
        %v439 = vld [vmem:[%s355 + $0x8] sm:$0xf]
        %v440 = vld [vmem:[%s355 + $0xc] sm:$0xf]
        %v441 = vld [vmem:[%s355 + $0x10] sm:$0xf]
        %v442 = vld [vmem:[%s355 + $0x14] sm:$0xf]
        %v443 = vld [vmem:[%s355 + $0x18] sm:$0xf]
        %v444 = vld [vmem:[%s355 + $0x1c] sm:$0xf]
        %v445 = vld [vmem:[%s355 + $0x20] sm:$0xf]
        %v446 = vld [vmem:[%s355 + $0x24] sm:$0xf]
        %v447 = vld [vmem:[%s355 + $0x28] sm:$0xf]
        %v448 = vld [vmem:[%s355 + $0x2c] sm:$0xf]
        %v449 = vld [vmem:[%s355 + $0x30] sm:$0xf]
        %v450 = vld [vmem:[%s355 + $0x34] sm:$0xf]
        %v451 = vld [vmem:[%s355 + $0x38] sm:$0xf]
        %v452 = vld [vmem:[%s355 + $0x3c] sm:$0xf]
        %v453 = vld [vmem:[#allocation10] sm:$0xf]
        %v454 = vld [vmem:[#allocation10 + $0x4] sm:$0xf]
        %v455 = vld [vmem:[#allocation10 + $0x8] sm:$0xf]
        %v456 = vld [vmem:[#allocation10 + $0xc] sm:$0xf]
        %v457 = vld [vmem:[#allocation10 + $0x10] sm:$0xf]
        %v458 = vld [vmem:[#allocation10 + $0x14] sm:$0xf]
        %v459 = vld [vmem:[#allocation10 + $0x18] sm:$0xf]
        %v460 = vld [vmem:[#allocation10 + $0x1c] sm:$0xf]
        %v461 = vld [vmem:[#allocation10 + $0x20] sm:$0xf]
        %v462 = vld [vmem:[#allocation10 + $0x24] sm:$0xf]
        %v463 = vld [vmem:[#allocation10 + $0x28] sm:$0xf]
        %v464 = vld [vmem:[#allocation10 + $0x2c] sm:$0xf]
        %v465 = vld [vmem:[#allocation10 + $0x30] sm:$0xf]
        %v466 = vld [vmem:[#allocation10 + $0x34] sm:$0xf]
        %v467 = vld [vmem:[#allocation10 + $0x38] sm:$0xf]
        %v468 = vld [vmem:[#allocation10 + $0x3c] sm:$0xf]
        %v469 = vld [vmem:[%s373] sm:$0xf]
        %v470 = vld [vmem:[%s373 + $0x4] sm:$0xf]
        %v471 = vld [vmem:[%s373 + $0x8] sm:$0xf]
        %v472 = vld [vmem:[%s373 + $0xc] sm:$0xf]
        %v473 = vld [vmem:[%s373 + $0x10] sm:$0xf]
        %v474 = vld [vmem:[%s373 + $0x14] sm:$0xf]
        %v475 = vld [vmem:[%s373 + $0x18] sm:$0xf]
        %v476 = vld [vmem:[%s373 + $0x1c] sm:$0xf]
        %v477 = vld [vmem:[%s373 + $0x20] sm:$0xf]
        %v478 = vld [vmem:[%s373 + $0x24] sm:$0xf]
        %v479 = vld [vmem:[%s373 + $0x28] sm:$0xf]
        %v480 = vld [vmem:[%s373 + $0x2c] sm:$0xf]
        %v481 = vld [vmem:[%s373 + $0x30] sm:$0xf]
        %v482 = vld [vmem:[%s373 + $0x34] sm:$0xf]
        %v483 = vld [vmem:[%s373 + $0x38] sm:$0xf]
        %v484 = vld [vmem:[%s373 + $0x3c] sm:$0xf]
        %s485 = scalar_lea.vmem [#allocation10], 192
        %v486 = vld [vmem:[%s485] sm:$0xf]
        %v487 = vld [vmem:[%s485 + $0x4] sm:$0xf]
        %v488 = vld [vmem:[%s485 + $0x8] sm:$0xf]
        %v489 = vld [vmem:[%s485 + $0xc] sm:$0xf]
        %v490 = vld [vmem:[%s485 + $0x10] sm:$0xf]
        %v491 = vld [vmem:[%s485 + $0x14] sm:$0xf]
        %v492 = vld [vmem:[%s485 + $0x18] sm:$0xf]
        %v493 = vld [vmem:[%s485 + $0x1c] sm:$0xf]
        %v494 = vld [vmem:[%s485 + $0x20] sm:$0xf]
        %v495 = vld [vmem:[%s485 + $0x24] sm:$0xf]
        %v496 = vld [vmem:[%s485 + $0x28] sm:$0xf]
        %v497 = vld [vmem:[%s485 + $0x2c] sm:$0xf]
        %v498 = vld [vmem:[%s485 + $0x30] sm:$0xf]
        %v499 = vld [vmem:[%s485 + $0x34] sm:$0xf]
        %v500 = vld [vmem:[%s485 + $0x38] sm:$0xf]
        %v501 = vld [vmem:[%s485 + $0x3c] sm:$0xf]
        %v518 = vunpack.c.l.b16 %v469
        %v519 = vunpack.c.l.b16 %v470
        %v520 = vunpack.c.l.b16 %v471
        %v521 = vunpack.c.l.b16 %v472
        %v522 = vunpack.c.l.b16 %v473
        %v523 = vunpack.c.l.b16 %v474
        %v524 = vunpack.c.l.b16 %v475
        %v525 = vunpack.c.l.b16 %v476
        %v526 = vunpack.c.l.b16 %v477
        %v527 = vunpack.c.l.b16 %v478
        %v528 = vunpack.c.l.b16 %v479
        %v529 = vunpack.c.l.b16 %v480
        %v530 = vunpack.c.l.b16 %v481
        %v531 = vunpack.c.l.b16 %v482
        %v532 = vunpack.c.l.b16 %v483
        %v533 = vunpack.c.l.b16 %v484
        %v534 = vpack.c.b16 %v519, %v518
        %v535 = vpack.c.b16 %v521, %v520
        %v536 = vpack.c.b16 %v523, %v522
        %v537 = vpack.c.b16 %v525, %v524
        %v538 = vpack.c.b16 %v527, %v526
        %v539 = vpack.c.b16 %v529, %v528
        %v540 = vpack.c.b16 %v531, %v530
        %v541 = vpack.c.b16 %v533, %v532
        %v566 = vunpack.c.l.b16 %v486
        %v567 = vunpack.c.l.b16 %v487
        %v568 = vunpack.c.l.b16 %v488
        %v569 = vunpack.c.l.b16 %v489
        %v570 = vunpack.c.l.b16 %v490
        %v571 = vunpack.c.l.b16 %v491
        %v572 = vunpack.c.l.b16 %v492
        %v573 = vunpack.c.l.b16 %v493
        %v574 = vunpack.c.l.b16 %v494
        %v575 = vunpack.c.l.b16 %v495
        %v576 = vunpack.c.l.b16 %v496
        %v577 = vunpack.c.l.b16 %v497
        %v578 = vunpack.c.l.b16 %v498
        %v579 = vunpack.c.l.b16 %v499
        %v580 = vunpack.c.l.b16 %v500
        %v581 = vunpack.c.l.b16 %v501
        %v582 = vpack.c.b16 %v567, %v566
        %v583 = vpack.c.b16 %v569, %v568
        %v584 = vpack.c.b16 %v571, %v570
        %v585 = vpack.c.b16 %v573, %v572
        %v586 = vpack.c.b16 %v575, %v574
        %v587 = vpack.c.b16 %v577, %v576
        %v588 = vpack.c.b16 %v579, %v578
        %v589 = vpack.c.b16 %v581, %v580
        %598 = vmatprep.subr.bf16.mxu0 0
        %599 = vmatpush1.bf16.msra.mxu0 %v582
        %600 = vmatprep.subr.bf16.mxu0 0
        %601 = vmatpush1.bf16.msra.mxu0 %v583
        %602 = vmatprep.subr.bf16.mxu0 0
        %603 = vmatpush1.bf16.msra.mxu0 %v584
        %604 = vmatprep.subr.bf16.mxu0 0
        %605 = vmatpush1.bf16.msra.mxu0 %v585
        %606 = vmatprep.subr.bf16.mxu0 0
        %607 = vmatpush1.bf16.msra.mxu0 %v586
        %608 = vmatprep.subr.bf16.mxu0 0
        %609 = vmatpush1.bf16.msra.mxu0 %v587
        %610 = vmatprep.subr.bf16.mxu0 0
        %611 = vmatpush1.bf16.msra.mxu0 %v588
        %612 = vmatprep.subr.bf16.mxu0 0
        %613 = vmatpush1.bf16.msra.mxu0 %v589
        %614 = vmatprep.subr.bf16.mxu0 0
        %615 = vmatpush1.bf16.msra.mxu0 0
        %616 = vmatprep.subr.bf16.mxu0 0
        %617 = vmatpush1.bf16.msra.mxu0 0
        %618 = vmatprep.subr.bf16.mxu0 0
        %619 = vmatpush1.bf16.msra.mxu0 0
        %620 = vmatprep.subr.bf16.mxu0 0
        %621 = vmatpush1.bf16.msra.mxu0 0
        %622 = vmatprep.subr.bf16.mxu0 0
        %623 = vmatpush1.bf16.msra.mxu0 0
        %624 = vmatprep.subr.bf16.mxu0 0
        %625 = vmatpush1.bf16.msra.mxu0 0
        %626 = vmatprep.subr.bf16.mxu0 0
        %627 = vmatpush1.bf16.msra.mxu0 0
        %628 = vmatprep.subr.bf16.mxu0 0
        %629 = vmatpush1.bf16.msra.mxu0 0
        %630 = vmatprep.mubr.bf16.mxu0 0
        %631 = vmatmul.mubr.bf16.gmra.mrb[0].mxu0 %v534
        %v632 = vpop.f32.mrb[0].mxu0
        %v633 = vadd.f32 0.0, %v632
        %v634 = vpop.f32.mrb[0].mxu0
        %v635 = vpop.f32.mrb[0].mxu0
        %v636 = vpop.f32.mrb[0].mxu0
        %637 = vmatprep.mubr.bf16.mxu0 0
        %638 = vmatmul.mubr.bf16.gmra.mrb[0].mxu0 %v535
        %v639 = vpop.f32.mrb[0].mxu0
        %v640 = vadd.f32 0.0, %v639
        %v641 = vpop.f32.mrb[0].mxu0
        %v642 = vpop.f32.mrb[0].mxu0
        %v643 = vpop.f32.mrb[0].mxu0
        %644 = vmatprep.mubr.bf16.mxu0 0
        %645 = vmatmul.mubr.bf16.gmra.mrb[0].mxu0 %v536
        %v646 = vpop.f32.mrb[0].mxu0
        %v647 = vadd.f32 0.0, %v646
        %v648 = vpop.f32.mrb[0].mxu0
        %v649 = vpop.f32.mrb[0].mxu0
        %v650 = vpop.f32.mrb[0].mxu0
        %651 = vmatprep.mubr.bf16.mxu0 0
        %652 = vmatmul.mubr.bf16.gmra.mrb[0].mxu0 %v537
        %v653 = vpop.f32.mrb[0].mxu0
        %v654 = vadd.f32 0.0, %v653
        %v655 = vpop.f32.mrb[0].mxu0
        %v656 = vpop.f32.mrb[0].mxu0
        %v657 = vpop.f32.mrb[0].mxu0
        %658 = vmatprep.mubr.bf16.mxu0 0
        %659 = vmatmul.mubr.bf16.gmra.mrb[0].mxu0 %v538
        %v660 = vpop.f32.mrb[0].mxu0
        %v661 = vadd.f32 0.0, %v660
        %v662 = vpop.f32.mrb[0].mxu0
        %v663 = vpop.f32.mrb[0].mxu0
        %v664 = vpop.f32.mrb[0].mxu0
        %665 = vmatprep.mubr.bf16.mxu0 0
        %666 = vmatmul.mubr.bf16.gmra.mrb[0].mxu0 %v539
        %v667 = vpop.f32.mrb[0].mxu0
        %v668 = vadd.f32 0.0, %v667
        %v669 = vpop.f32.mrb[0].mxu0
        %v670 = vpop.f32.mrb[0].mxu0
        %v671 = vpop.f32.mrb[0].mxu0
        %672 = vmatprep.mubr.bf16.mxu0 0
        %673 = vmatmul.mubr.bf16.gmra.mrb[0].mxu0 %v540
        %v674 = vpop.f32.mrb[0].mxu0
        %v675 = vadd.f32 0.0, %v674
        %v676 = vpop.f32.mrb[0].mxu0
        %v677 = vpop.f32.mrb[0].mxu0
        %v678 = vpop.f32.mrb[0].mxu0
        %679 = vmatprep.mubr.bf16.mxu0 0
        %680 = vmatmul.mubr.bf16.gmra.mrb[0].mxu0 %v541
        %v681 = vpop.f32.mrb[0].mxu0
        %v682 = vadd.f32 0.0, %v681
        %v683 = vpop.f32.mrb[0].mxu0
        %v684 = vpop.f32.mrb[0].mxu0
        %v685 = vpop.f32.mrb[0].mxu0
        %686 = vdwg.mxu0
        %v703 = vunpack.c.l.b16 %v437
        %v704 = vunpack.c.l.b16 %v438
        %v705 = vunpack.c.l.b16 %v439
        %v706 = vunpack.c.l.b16 %v440
        %v707 = vunpack.c.l.b16 %v441
        %v708 = vunpack.c.l.b16 %v442
        %v709 = vunpack.c.l.b16 %v443
        %v710 = vunpack.c.l.b16 %v444
        %v711 = vunpack.c.l.b16 %v445
        %v712 = vunpack.c.l.b16 %v446
        %v713 = vunpack.c.l.b16 %v447
        %v714 = vunpack.c.l.b16 %v448
        %v715 = vunpack.c.l.b16 %v449
        %v716 = vunpack.c.l.b16 %v450
        %v717 = vunpack.c.l.b16 %v451
        %v718 = vunpack.c.l.b16 %v452
        %v719 = vpack.c.b16 %v704, %v703
        %v720 = vpack.c.b16 %v706, %v705
        %v721 = vpack.c.b16 %v708, %v707
        %v722 = vpack.c.b16 %v710, %v709
        %v723 = vpack.c.b16 %v712, %v711
        %v724 = vpack.c.b16 %v714, %v713
        %v725 = vpack.c.b16 %v716, %v715
        %v726 = vpack.c.b16 %v718, %v717
        %v751 = vunpack.c.l.b16 %v453
        %v752 = vunpack.c.l.b16 %v454
        %v753 = vunpack.c.l.b16 %v455
        %v754 = vunpack.c.l.b16 %v456
        %v755 = vunpack.c.l.b16 %v457
        %v756 = vunpack.c.l.b16 %v458
        %v757 = vunpack.c.l.b16 %v459
        %v758 = vunpack.c.l.b16 %v460
        %v759 = vunpack.c.l.b16 %v461
        %v760 = vunpack.c.l.b16 %v462
        %v761 = vunpack.c.l.b16 %v463
        %v762 = vunpack.c.l.b16 %v464
        %v763 = vunpack.c.l.b16 %v465
        %v764 = vunpack.c.l.b16 %v466
        %v765 = vunpack.c.l.b16 %v467
        %v766 = vunpack.c.l.b16 %v468
        %v767 = vpack.c.b16 %v752, %v751
        %v768 = vpack.c.b16 %v754, %v753
        %v769 = vpack.c.b16 %v756, %v755
        %v770 = vpack.c.b16 %v758, %v757
        %v771 = vpack.c.b16 %v760, %v759
        %v772 = vpack.c.b16 %v762, %v761
        %v773 = vpack.c.b16 %v764, %v763
        %v774 = vpack.c.b16 %v766, %v765
        %783 = vmatprep.subr.bf16.mxu0 0
        %784 = vmatpush1.bf16.msra.mxu0 %v767
        %785 = vmatprep.subr.bf16.mxu0 0
        %786 = vmatpush1.bf16.msra.mxu0 %v768
        %787 = vmatprep.subr.bf16.mxu0 0
        %788 = vmatpush1.bf16.msra.mxu0 %v769
        %789 = vmatprep.subr.bf16.mxu0 0
        %790 = vmatpush1.bf16.msra.mxu0 %v770
        %791 = vmatprep.subr.bf16.mxu0 0
        %792 = vmatpush1.bf16.msra.mxu0 %v771
        %793 = vmatprep.subr.bf16.mxu0 0
        %794 = vmatpush1.bf16.msra.mxu0 %v772
        %795 = vmatprep.subr.bf16.mxu0 0
        %796 = vmatpush1.bf16.msra.mxu0 %v773
        %797 = vmatprep.subr.bf16.mxu0 0
        %798 = vmatpush1.bf16.msra.mxu0 %v774
        %799 = vmatprep.subr.bf16.mxu0 0
        %800 = vmatpush1.bf16.msra.mxu0 0
        %801 = vmatprep.subr.bf16.mxu0 0
        %802 = vmatpush1.bf16.msra.mxu0 0
        %803 = vmatprep.subr.bf16.mxu0 0
        %804 = vmatpush1.bf16.msra.mxu0 0
        %805 = vmatprep.subr.bf16.mxu0 0
        %806 = vmatpush1.bf16.msra.mxu0 0
        %807 = vmatprep.subr.bf16.mxu0 0
        %808 = vmatpush1.bf16.msra.mxu0 0
        %809 = vmatprep.subr.bf16.mxu0 0
        %810 = vmatpush1.bf16.msra.mxu0 0
        %811 = vmatprep.subr.bf16.mxu0 0
        %812 = vmatpush1.bf16.msra.mxu0 0
        %813 = vmatprep.subr.bf16.mxu0 0
        %814 = vmatpush1.bf16.msra.mxu0 0
        %815 = vmatprep.mubr.bf16.mxu0 0
        %816 = vmatmul.mubr.bf16.gmra.mrb[0].mxu0 %v719
        %v817 = vpop.f32.mrb[0].mxu0
        %v818 = vadd.f32 %v633, %v817
        %v819 = vpop.f32.mrb[0].mxu0
        %v820 = vpop.f32.mrb[0].mxu0
        %v821 = vpop.f32.mrb[0].mxu0
        %822 = vmatprep.mubr.bf16.mxu0 0
        %823 = vmatmul.mubr.bf16.gmra.mrb[0].mxu0 %v720
        %v824 = vpop.f32.mrb[0].mxu0
        %v825 = vadd.f32 %v640, %v824
        %v826 = vpop.f32.mrb[0].mxu0
        %v827 = vpop.f32.mrb[0].mxu0
        %v828 = vpop.f32.mrb[0].mxu0
        %829 = vmatprep.mubr.bf16.mxu0 0
        %830 = vmatmul.mubr.bf16.gmra.mrb[0].mxu0 %v721
        %v831 = vpop.f32.mrb[0].mxu0
        %v832 = vadd.f32 %v647, %v831
        %v833 = vpop.f32.mrb[0].mxu0
        %v834 = vpop.f32.mrb[0].mxu0
        %v835 = vpop.f32.mrb[0].mxu0
        %836 = vmatprep.mubr.bf16.mxu0 0
        %837 = vmatmul.mubr.bf16.gmra.mrb[0].mxu0 %v722
        %v838 = vpop.f32.mrb[0].mxu0
        %v839 = vadd.f32 %v654, %v838
        %v840 = vpop.f32.mrb[0].mxu0
        %v841 = vpop.f32.mrb[0].mxu0
        %v842 = vpop.f32.mrb[0].mxu0
        %843 = vmatprep.mubr.bf16.mxu0 0
        %844 = vmatmul.mubr.bf16.gmra.mrb[0].mxu0 %v723
        %v845 = vpop.f32.mrb[0].mxu0
        %v846 = vadd.f32 %v661, %v845
        %v847 = vpop.f32.mrb[0].mxu0
        %v848 = vpop.f32.mrb[0].mxu0
        %v849 = vpop.f32.mrb[0].mxu0
        %850 = vmatprep.mubr.bf16.mxu0 0
        %851 = vmatmul.mubr.bf16.gmra.mrb[0].mxu0 %v724
        %v852 = vpop.f32.mrb[0].mxu0
        %v853 = vadd.f32 %v668, %v852
        %v854 = vpop.f32.mrb[0].mxu0
        %v855 = vpop.f32.mrb[0].mxu0
        %v856 = vpop.f32.mrb[0].mxu0
        %857 = vmatprep.mubr.bf16.mxu0 0
        %858 = vmatmul.mubr.bf16.gmra.mrb[0].mxu0 %v725
        %v859 = vpop.f32.mrb[0].mxu0
        %v860 = vadd.f32 %v675, %v859
        %v861 = vpop.f32.mrb[0].mxu0
        %v862 = vpop.f32.mrb[0].mxu0
        %v863 = vpop.f32.mrb[0].mxu0
        %864 = vmatprep.mubr.bf16.mxu0 0
        %865 = vmatmul.mubr.bf16.gmra.mrb[0].mxu0 %v726
        %v866 = vpop.f32.mrb[0].mxu0
        %v867 = vadd.f32 %v682, %v866
        %v868 = vpop.f32.mrb[0].mxu0
        %v869 = vpop.f32.mrb[0].mxu0
        %v870 = vpop.f32.mrb[0].mxu0
        %871 = vdwg.mxu0
        %s872 = scalar_lea.vmem %s355, 8 [#allocation2]
        %v873 = vld [vmem:[%s872] sm:$0xf]
        %v874 = vld [vmem:[%s872 + $0x4] sm:$0xf]
        %v875 = vld [vmem:[%s872 + $0x8] sm:$0xf]
        %v876 = vld [vmem:[%s872 + $0xc] sm:$0xf]
        %v877 = vld [vmem:[%s872 + $0x10] sm:$0xf]
        %v878 = vld [vmem:[%s872 + $0x14] sm:$0xf]
        %v879 = vld [vmem:[%s872 + $0x18] sm:$0xf]
        %v880 = vld [vmem:[%s872 + $0x1c] sm:$0xf]
        %v881 = vld [vmem:[%s872 + $0x20] sm:$0xf]
        %v882 = vld [vmem:[%s872 + $0x24] sm:$0xf]
        %v883 = vld [vmem:[%s872 + $0x28] sm:$0xf]
        %v884 = vld [vmem:[%s872 + $0x2c] sm:$0xf]
        %v885 = vld [vmem:[%s872 + $0x30] sm:$0xf]
        %v886 = vld [vmem:[%s872 + $0x34] sm:$0xf]
        %v887 = vld [vmem:[%s872 + $0x38] sm:$0xf]
        %v888 = vld [vmem:[%s872 + $0x3c] sm:$0xf]
        %s889 = scalar_lea.vmem [#allocation10], 384
        %v890 = vld [vmem:[%s889] sm:$0xf]
        %v891 = vld [vmem:[%s889 + $0x4] sm:$0xf]
        %v892 = vld [vmem:[%s889 + $0x8] sm:$0xf]
        %v893 = vld [vmem:[%s889 + $0xc] sm:$0xf]
        %v894 = vld [vmem:[%s889 + $0x10] sm:$0xf]
        %v895 = vld [vmem:[%s889 + $0x14] sm:$0xf]
        %v896 = vld [vmem:[%s889 + $0x18] sm:$0xf]
        %v897 = vld [vmem:[%s889 + $0x1c] sm:$0xf]
        %v898 = vld [vmem:[%s889 + $0x20] sm:$0xf]
        %v899 = vld [vmem:[%s889 + $0x24] sm:$0xf]
        %v900 = vld [vmem:[%s889 + $0x28] sm:$0xf]
        %v901 = vld [vmem:[%s889 + $0x2c] sm:$0xf]
        %v902 = vld [vmem:[%s889 + $0x30] sm:$0xf]
        %v903 = vld [vmem:[%s889 + $0x34] sm:$0xf]
        %v904 = vld [vmem:[%s889 + $0x38] sm:$0xf]
        %v905 = vld [vmem:[%s889 + $0x3c] sm:$0xf]
        %v922 = vunpack.c.l.b16 %v873
        %v923 = vunpack.c.l.b16 %v874
        %v924 = vunpack.c.l.b16 %v875
        %v925 = vunpack.c.l.b16 %v876
        %v926 = vunpack.c.l.b16 %v877
        %v927 = vunpack.c.l.b16 %v878
        %v928 = vunpack.c.l.b16 %v879
        %v929 = vunpack.c.l.b16 %v880
        %v930 = vunpack.c.l.b16 %v881
        %v931 = vunpack.c.l.b16 %v882
        %v932 = vunpack.c.l.b16 %v883
        %v933 = vunpack.c.l.b16 %v884
        %v934 = vunpack.c.l.b16 %v885
        %v935 = vunpack.c.l.b16 %v886
        %v936 = vunpack.c.l.b16 %v887
        %v937 = vunpack.c.l.b16 %v888
        %v938 = vpack.c.b16 %v923, %v922
        %v939 = vpack.c.b16 %v925, %v924
        %v940 = vpack.c.b16 %v927, %v926
        %v941 = vpack.c.b16 %v929, %v928
        %v942 = vpack.c.b16 %v931, %v930
        %v943 = vpack.c.b16 %v933, %v932
        %v944 = vpack.c.b16 %v935, %v934
        %v945 = vpack.c.b16 %v937, %v936
        %v970 = vunpack.c.l.b16 %v890
        %v971 = vunpack.c.l.b16 %v891
        %v972 = vunpack.c.l.b16 %v892
        %v973 = vunpack.c.l.b16 %v893
        %v974 = vunpack.c.l.b16 %v894
        %v975 = vunpack.c.l.b16 %v895
        %v976 = vunpack.c.l.b16 %v896
        %v977 = vunpack.c.l.b16 %v897
        %v978 = vunpack.c.l.b16 %v898
        %v979 = vunpack.c.l.b16 %v899
        %v980 = vunpack.c.l.b16 %v900
        %v981 = vunpack.c.l.b16 %v901
        %v982 = vunpack.c.l.b16 %v902
        %v983 = vunpack.c.l.b16 %v903
        %v984 = vunpack.c.l.b16 %v904
        %v985 = vunpack.c.l.b16 %v905
        %v986 = vpack.c.b16 %v971, %v970
        %v987 = vpack.c.b16 %v973, %v972
        %v988 = vpack.c.b16 %v975, %v974
        %v989 = vpack.c.b16 %v977, %v976
        %v990 = vpack.c.b16 %v979, %v978
        %v991 = vpack.c.b16 %v981, %v980
        %v992 = vpack.c.b16 %v983, %v982
        %v993 = vpack.c.b16 %v985, %v984
        %1002 = vmatprep.subr.bf16.mxu0 0
        %1003 = vmatpush1.bf16.msra.mxu0 %v986
        %1004 = vmatprep.subr.bf16.mxu0 0
        %1005 = vmatpush1.bf16.msra.mxu0 %v987
        %1006 = vmatprep.subr.bf16.mxu0 0
        %1007 = vmatpush1.bf16.msra.mxu0 %v988
        %1008 = vmatprep.subr.bf16.mxu0 0
        %1009 = vmatpush1.bf16.msra.mxu0 %v989
        %1010 = vmatprep.subr.bf16.mxu0 0
        %1011 = vmatpush1.bf16.msra.mxu0 %v990
        %1012 = vmatprep.subr.bf16.mxu0 0
        %1013 = vmatpush1.bf16.msra.mxu0 %v991
        %1014 = vmatprep.subr.bf16.mxu0 0
        %1015 = vmatpush1.bf16.msra.mxu0 %v992
        %1016 = vmatprep.subr.bf16.mxu0 0
        %1017 = vmatpush1.bf16.msra.mxu0 %v993
        %1018 = vmatprep.subr.bf16.mxu0 0
        %1019 = vmatpush1.bf16.msra.mxu0 0
        %1020 = vmatprep.subr.bf16.mxu0 0
        %1021 = vmatpush1.bf16.msra.mxu0 0
        %1022 = vmatprep.subr.bf16.mxu0 0
        %1023 = vmatpush1.bf16.msra.mxu0 0
        %1024 = vmatprep.subr.bf16.mxu0 0
        %1025 = vmatpush1.bf16.msra.mxu0 0
        %1026 = vmatprep.subr.bf16.mxu0 0
        %1027 = vmatpush1.bf16.msra.mxu0 0
        %1028 = vmatprep.subr.bf16.mxu0 0
        %1029 = vmatpush1.bf16.msra.mxu0 0
        %1030 = vmatprep.subr.bf16.mxu0 0
        %1031 = vmatpush1.bf16.msra.mxu0 0
        %1032 = vmatprep.subr.bf16.mxu0 0
        %1033 = vmatpush1.bf16.msra.mxu0 0
        %1034 = vmatprep.mubr.bf16.mxu0 0
        %1035 = vmatmul.mubr.bf16.gmra.mrb[0].mxu0 %v938
        %v1036 = vpop.f32.mrb[0].mxu0
        %v1037 = vadd.f32 0.0, %v1036
        %v1038 = vpop.f32.mrb[0].mxu0
        %v1039 = vpop.f32.mrb[0].mxu0
        %v1040 = vpop.f32.mrb[0].mxu0
        %1041 = vmatprep.mubr.bf16.mxu0 0
        %1042 = vmatmul.mubr.bf16.gmra.mrb[0].mxu0 %v939
        %v1043 = vpop.f32.mrb[0].mxu0
        %v1044 = vadd.f32 0.0, %v1043
        %v1045 = vpop.f32.mrb[0].mxu0
        %v1046 = vpop.f32.mrb[0].mxu0
        %v1047 = vpop.f32.mrb[0].mxu0
        %1048 = vmatprep.mubr.bf16.mxu0 0
        %1049 = vmatmul.mubr.bf16.gmra.mrb[0].mxu0 %v940
        %v1050 = vpop.f32.mrb[0].mxu0
        %v1051 = vadd.f32 0.0, %v1050
        %v1052 = vpop.f32.mrb[0].mxu0
        %v1053 = vpop.f32.mrb[0].mxu0
        %v1054 = vpop.f32.mrb[0].mxu0
        %1055 = vmatprep.mubr.bf16.mxu0 0
        %1056 = vmatmul.mubr.bf16.gmra.mrb[0].mxu0 %v941
        %v1057 = vpop.f32.mrb[0].mxu0
        %v1058 = vadd.f32 0.0, %v1057
        %v1059 = vpop.f32.mrb[0].mxu0
        %v1060 = vpop.f32.mrb[0].mxu0
        %v1061 = vpop.f32.mrb[0].mxu0
        %1062 = vmatprep.mubr.bf16.mxu0 0
        %1063 = vmatmul.mubr.bf16.gmra.mrb[0].mxu0 %v942
        %v1064 = vpop.f32.mrb[0].mxu0
        %v1065 = vadd.f32 0.0, %v1064
        %v1066 = vpop.f32.mrb[0].mxu0
        %v1067 = vpop.f32.mrb[0].mxu0
        %v1068 = vpop.f32.mrb[0].mxu0
        %1069 = vmatprep.mubr.bf16.mxu0 0
        %1070 = vmatmul.mubr.bf16.gmra.mrb[0].mxu0 %v943
        %v1071 = vpop.f32.mrb[0].mxu0
        %v1072 = vadd.f32 0.0, %v1071
        %v1073 = vpop.f32.mrb[0].mxu0
        %v1074 = vpop.f32.mrb[0].mxu0
        %v1075 = vpop.f32.mrb[0].mxu0
        %1076 = vmatprep.mubr.bf16.mxu0 0
        %1077 = vmatmul.mubr.bf16.gmra.mrb[0].mxu0 %v944
        %v1078 = vpop.f32.mrb[0].mxu0
        %v1079 = vadd.f32 0.0, %v1078
        %v1080 = vpop.f32.mrb[0].mxu0
        %v1081 = vpop.f32.mrb[0].mxu0
        %v1082 = vpop.f32.mrb[0].mxu0
        %1083 = vmatprep.mubr.bf16.mxu0 0
        %1084 = vmatmul.mubr.bf16.gmra.mrb[0].mxu0 %v945
        %v1085 = vpop.f32.mrb[0].mxu0
        %v1086 = vadd.f32 0.0, %v1085
        %v1087 = vpop.f32.mrb[0].mxu0
        %v1088 = vpop.f32.mrb[0].mxu0
        %v1089 = vpop.f32.mrb[0].mxu0
        %1090 = vdwg.mxu0
        %v1091 = vadd.f32 %v818, %v1037
        %v1092 = vadd.f32 %v825, %v1044
        %v1093 = vadd.f32 %v832, %v1051
        %v1094 = vadd.f32 %v839, %v1058
        %v1095 = vadd.f32 %v846, %v1065
        %v1096 = vadd.f32 %v853, %v1072
        %v1097 = vadd.f32 %v860, %v1079
        %v1098 = vadd.f32 %v867, %v1086
        %v1099 = vld [vmem:[%s364] sm:$0xf]
        %v1100 = vld [vmem:[%s364 + $0x4] sm:$0xf]
        %v1101 = vld [vmem:[%s364 + $0x8] sm:$0xf]
        %v1102 = vld [vmem:[%s364 + $0xc] sm:$0xf]
        %v1103 = vld [vmem:[%s364 + $0x10] sm:$0xf]
        %v1104 = vld [vmem:[%s364 + $0x14] sm:$0xf]
        %v1105 = vld [vmem:[%s364 + $0x18] sm:$0xf]
        %v1106 = vld [vmem:[%s364 + $0x1c] sm:$0xf]
        %v1107 = vld [vmem:[%s364 + $0x20] sm:$0xf]
        %v1108 = vld [vmem:[%s364 + $0x24] sm:$0xf]
        %v1109 = vld [vmem:[%s364 + $0x28] sm:$0xf]
        %v1110 = vld [vmem:[%s364 + $0x2c] sm:$0xf]
        %v1111 = vld [vmem:[%s364 + $0x30] sm:$0xf]
        %v1112 = vld [vmem:[%s364 + $0x34] sm:$0xf]
        %v1113 = vld [vmem:[%s364 + $0x38] sm:$0xf]
        %v1114 = vld [vmem:[%s364 + $0x3c] sm:$0xf]
        %s1115 = scalar_lea.vmem [#allocation10], 64
        %v1116 = vld [vmem:[%s1115] sm:$0xf]
        %v1117 = vld [vmem:[%s1115 + $0x4] sm:$0xf]
        %v1118 = vld [vmem:[%s1115 + $0x8] sm:$0xf]
        %v1119 = vld [vmem:[%s1115 + $0xc] sm:$0xf]
        %v1120 = vld [vmem:[%s1115 + $0x10] sm:$0xf]
        %v1121 = vld [vmem:[%s1115 + $0x14] sm:$0xf]
        %v1122 = vld [vmem:[%s1115 + $0x18] sm:$0xf]
        %v1123 = vld [vmem:[%s1115 + $0x1c] sm:$0xf]
        %v1124 = vld [vmem:[%s1115 + $0x20] sm:$0xf]
        %v1125 = vld [vmem:[%s1115 + $0x24] sm:$0xf]
        %v1126 = vld [vmem:[%s1115 + $0x28] sm:$0xf]
        %v1127 = vld [vmem:[%s1115 + $0x2c] sm:$0xf]
        %v1128 = vld [vmem:[%s1115 + $0x30] sm:$0xf]
        %v1129 = vld [vmem:[%s1115 + $0x34] sm:$0xf]
        %v1130 = vld [vmem:[%s1115 + $0x38] sm:$0xf]
        %v1131 = vld [vmem:[%s1115 + $0x3c] sm:$0xf]
        %v1132 = vld [vmem:[%s382] sm:$0xf]
        %v1133 = vld [vmem:[%s382 + $0x4] sm:$0xf]
        %v1134 = vld [vmem:[%s382 + $0x8] sm:$0xf]
        %v1135 = vld [vmem:[%s382 + $0xc] sm:$0xf]
        %v1136 = vld [vmem:[%s382 + $0x10] sm:$0xf]
        %v1137 = vld [vmem:[%s382 + $0x14] sm:$0xf]
        %v1138 = vld [vmem:[%s382 + $0x18] sm:$0xf]
        %v1139 = vld [vmem:[%s382 + $0x1c] sm:$0xf]
        %v1140 = vld [vmem:[%s382 + $0x20] sm:$0xf]
        %v1141 = vld [vmem:[%s382 + $0x24] sm:$0xf]
        %v1142 = vld [vmem:[%s382 + $0x28] sm:$0xf]
        %v1143 = vld [vmem:[%s382 + $0x2c] sm:$0xf]
        %v1144 = vld [vmem:[%s382 + $0x30] sm:$0xf]
        %v1145 = vld [vmem:[%s382 + $0x34] sm:$0xf]
        %v1146 = vld [vmem:[%s382 + $0x38] sm:$0xf]
        %v1147 = vld [vmem:[%s382 + $0x3c] sm:$0xf]
        %s1148 = scalar_lea.vmem [#allocation10], 256
        %v1149 = vld [vmem:[%s1148] sm:$0xf]
        %v1150 = vld [vmem:[%s1148 + $0x4] sm:$0xf]
        %v1151 = vld [vmem:[%s1148 + $0x8] sm:$0xf]
        %v1152 = vld [vmem:[%s1148 + $0xc] sm:$0xf]
        %v1153 = vld [vmem:[%s1148 + $0x10] sm:$0xf]
        %v1154 = vld [vmem:[%s1148 + $0x14] sm:$0xf]
        %v1155 = vld [vmem:[%s1148 + $0x18] sm:$0xf]
        %v1156 = vld [vmem:[%s1148 + $0x1c] sm:$0xf]
        %v1157 = vld [vmem:[%s1148 + $0x20] sm:$0xf]
        %v1158 = vld [vmem:[%s1148 + $0x24] sm:$0xf]
        %v1159 = vld [vmem:[%s1148 + $0x28] sm:$0xf]
        %v1160 = vld [vmem:[%s1148 + $0x2c] sm:$0xf]
        %v1161 = vld [vmem:[%s1148 + $0x30] sm:$0xf]
        %v1162 = vld [vmem:[%s1148 + $0x34] sm:$0xf]
        %v1163 = vld [vmem:[%s1148 + $0x38] sm:$0xf]
        %v1164 = vld [vmem:[%s1148 + $0x3c] sm:$0xf]
        %v1181 = vunpack.c.l.b16 %v1132
        %v1182 = vunpack.c.l.b16 %v1133
        %v1183 = vunpack.c.l.b16 %v1134
        %v1184 = vunpack.c.l.b16 %v1135
        %v1185 = vunpack.c.l.b16 %v1136
        %v1186 = vunpack.c.l.b16 %v1137
        %v1187 = vunpack.c.l.b16 %v1138
        %v1188 = vunpack.c.l.b16 %v1139
        %v1189 = vunpack.c.l.b16 %v1140
        %v1190 = vunpack.c.l.b16 %v1141
        %v1191 = vunpack.c.l.b16 %v1142
        %v1192 = vunpack.c.l.b16 %v1143
        %v1193 = vunpack.c.l.b16 %v1144
        %v1194 = vunpack.c.l.b16 %v1145
        %v1195 = vunpack.c.l.b16 %v1146
        %v1196 = vunpack.c.l.b16 %v1147
        %v1197 = vpack.c.b16 %v1182, %v1181
        %v1198 = vpack.c.b16 %v1184, %v1183
        %v1199 = vpack.c.b16 %v1186, %v1185
        %v1200 = vpack.c.b16 %v1188, %v1187
        %v1201 = vpack.c.b16 %v1190, %v1189
        %v1202 = vpack.c.b16 %v1192, %v1191
        %v1203 = vpack.c.b16 %v1194, %v1193
        %v1204 = vpack.c.b16 %v1196, %v1195
        %v1229 = vunpack.c.l.b16 %v1149
        %v1230 = vunpack.c.l.b16 %v1150
        %v1231 = vunpack.c.l.b16 %v1151
        %v1232 = vunpack.c.l.b16 %v1152
        %v1233 = vunpack.c.l.b16 %v1153
        %v1234 = vunpack.c.l.b16 %v1154
        %v1235 = vunpack.c.l.b16 %v1155
        %v1236 = vunpack.c.l.b16 %v1156
        %v1237 = vunpack.c.l.b16 %v1157
        %v1238 = vunpack.c.l.b16 %v1158
        %v1239 = vunpack.c.l.b16 %v1159
        %v1240 = vunpack.c.l.b16 %v1160
        %v1241 = vunpack.c.l.b16 %v1161
        %v1242 = vunpack.c.l.b16 %v1162
        %v1243 = vunpack.c.l.b16 %v1163
        %v1244 = vunpack.c.l.b16 %v1164
        %v1245 = vpack.c.b16 %v1230, %v1229
        %v1246 = vpack.c.b16 %v1232, %v1231
        %v1247 = vpack.c.b16 %v1234, %v1233
        %v1248 = vpack.c.b16 %v1236, %v1235
        %v1249 = vpack.c.b16 %v1238, %v1237
        %v1250 = vpack.c.b16 %v1240, %v1239
        %v1251 = vpack.c.b16 %v1242, %v1241
        %v1252 = vpack.c.b16 %v1244, %v1243
        %1261 = vmatprep.subr.bf16.mxu0 0
        %1262 = vmatpush1.bf16.msra.mxu0 %v1245
        %1263 = vmatprep.subr.bf16.mxu0 0
        %1264 = vmatpush1.bf16.msra.mxu0 %v1246
        %1265 = vmatprep.subr.bf16.mxu0 0
        %1266 = vmatpush1.bf16.msra.mxu0 %v1247
        %1267 = vmatprep.subr.bf16.mxu0 0
        %1268 = vmatpush1.bf16.msra.mxu0 %v1248
        %1269 = vmatprep.subr.bf16.mxu0 0
        %1270 = vmatpush1.bf16.msra.mxu0 %v1249
        %1271 = vmatprep.subr.bf16.mxu0 0
        %1272 = vmatpush1.bf16.msra.mxu0 %v1250
        %1273 = vmatprep.subr.bf16.mxu0 0
        %1274 = vmatpush1.bf16.msra.mxu0 %v1251
        %1275 = vmatprep.subr.bf16.mxu0 0
        %1276 = vmatpush1.bf16.msra.mxu0 %v1252
        %1277 = vmatprep.subr.bf16.mxu0 0
        %1278 = vmatpush1.bf16.msra.mxu0 0
        %1279 = vmatprep.subr.bf16.mxu0 0
        %1280 = vmatpush1.bf16.msra.mxu0 0
        %1281 = vmatprep.subr.bf16.mxu0 0
        %1282 = vmatpush1.bf16.msra.mxu0 0
        %1283 = vmatprep.subr.bf16.mxu0 0
        %1284 = vmatpush1.bf16.msra.mxu0 0
        %1285 = vmatprep.subr.bf16.mxu0 0
        %1286 = vmatpush1.bf16.msra.mxu0 0
        %1287 = vmatprep.subr.bf16.mxu0 0
        %1288 = vmatpush1.bf16.msra.mxu0 0
        %1289 = vmatprep.subr.bf16.mxu0 0
        %1290 = vmatpush1.bf16.msra.mxu0 0
        %1291 = vmatprep.subr.bf16.mxu0 0
        %1292 = vmatpush1.bf16.msra.mxu0 0
        %1293 = vmatprep.mubr.bf16.mxu0 0
        %1294 = vmatmul.mubr.bf16.gmra.mrb[0].mxu0 %v1197
        %v1295 = vpop.f32.mrb[0].mxu0
        %v1296 = vadd.f32 0.0, %v1295
        %v1297 = vpop.f32.mrb[0].mxu0
        %v1298 = vpop.f32.mrb[0].mxu0
        %v1299 = vpop.f32.mrb[0].mxu0
        %1300 = vmatprep.mubr.bf16.mxu0 0
        %1301 = vmatmul.mubr.bf16.gmra.mrb[0].mxu0 %v1198
        %v1302 = vpop.f32.mrb[0].mxu0
        %v1303 = vadd.f32 0.0, %v1302
        %v1304 = vpop.f32.mrb[0].mxu0
        %v1305 = vpop.f32.mrb[0].mxu0
        %v1306 = vpop.f32.mrb[0].mxu0
        %1307 = vmatprep.mubr.bf16.mxu0 0
        %1308 = vmatmul.mubr.bf16.gmra.mrb[0].mxu0 %v1199
        %v1309 = vpop.f32.mrb[0].mxu0
        %v1310 = vadd.f32 0.0, %v1309
        %v1311 = vpop.f32.mrb[0].mxu0
        %v1312 = vpop.f32.mrb[0].mxu0
        %v1313 = vpop.f32.mrb[0].mxu0
        %1314 = vmatprep.mubr.bf16.mxu0 0
        %1315 = vmatmul.mubr.bf16.gmra.mrb[0].mxu0 %v1200
        %v1316 = vpop.f32.mrb[0].mxu0
        %v1317 = vadd.f32 0.0, %v1316
        %v1318 = vpop.f32.mrb[0].mxu0
        %v1319 = vpop.f32.mrb[0].mxu0
        %v1320 = vpop.f32.mrb[0].mxu0
        %1321 = vmatprep.mubr.bf16.mxu0 0
        %1322 = vmatmul.mubr.bf16.gmra.mrb[0].mxu0 %v1201
        %v1323 = vpop.f32.mrb[0].mxu0
        %v1324 = vadd.f32 0.0, %v1323
        %v1325 = vpop.f32.mrb[0].mxu0
        %v1326 = vpop.f32.mrb[0].mxu0
        %v1327 = vpop.f32.mrb[0].mxu0
        %1328 = vmatprep.mubr.bf16.mxu0 0
        %1329 = vmatmul.mubr.bf16.gmra.mrb[0].mxu0 %v1202
        %v1330 = vpop.f32.mrb[0].mxu0
        %v1331 = vadd.f32 0.0, %v1330
        %v1332 = vpop.f32.mrb[0].mxu0
        %v1333 = vpop.f32.mrb[0].mxu0
        %v1334 = vpop.f32.mrb[0].mxu0
        %1335 = vmatprep.mubr.bf16.mxu0 0
        %1336 = vmatmul.mubr.bf16.gmra.mrb[0].mxu0 %v1203
        %v1337 = vpop.f32.mrb[0].mxu0
        %v1338 = vadd.f32 0.0, %v1337
        %v1339 = vpop.f32.mrb[0].mxu0
        %v1340 = vpop.f32.mrb[0].mxu0
        %v1341 = vpop.f32.mrb[0].mxu0
        %1342 = vmatprep.mubr.bf16.mxu0 0
        %1343 = vmatmul.mubr.bf16.gmra.mrb[0].mxu0 %v1204
        %v1344 = vpop.f32.mrb[0].mxu0
        %v1345 = vadd.f32 0.0, %v1344
        %v1346 = vpop.f32.mrb[0].mxu0
        %v1347 = vpop.f32.mrb[0].mxu0
        %v1348 = vpop.f32.mrb[0].mxu0
        %1349 = vdwg.mxu0
        %v1366 = vunpack.c.l.b16 %v1099
        %v1367 = vunpack.c.l.b16 %v1100
        %v1368 = vunpack.c.l.b16 %v1101
        %v1369 = vunpack.c.l.b16 %v1102
        %v1370 = vunpack.c.l.b16 %v1103
        %v1371 = vunpack.c.l.b16 %v1104
        %v1372 = vunpack.c.l.b16 %v1105
        %v1373 = vunpack.c.l.b16 %v1106
        %v1374 = vunpack.c.l.b16 %v1107
        %v1375 = vunpack.c.l.b16 %v1108
        %v1376 = vunpack.c.l.b16 %v1109
        %v1377 = vunpack.c.l.b16 %v1110
        %v1378 = vunpack.c.l.b16 %v1111
        %v1379 = vunpack.c.l.b16 %v1112
        %v1380 = vunpack.c.l.b16 %v1113
        %v1381 = vunpack.c.l.b16 %v1114
        %v1382 = vpack.c.b16 %v1367, %v1366
        %v1383 = vpack.c.b16 %v1369, %v1368
        %v1384 = vpack.c.b16 %v1371, %v1370
        %v1385 = vpack.c.b16 %v1373, %v1372
        %v1386 = vpack.c.b16 %v1375, %v1374
        %v1387 = vpack.c.b16 %v1377, %v1376
        %v1388 = vpack.c.b16 %v1379, %v1378
        %v1389 = vpack.c.b16 %v1381, %v1380
        %v1414 = vunpack.c.l.b16 %v1116
        %v1415 = vunpack.c.l.b16 %v1117
        %v1416 = vunpack.c.l.b16 %v1118
        %v1417 = vunpack.c.l.b16 %v1119
        %v1418 = vunpack.c.l.b16 %v1120
        %v1419 = vunpack.c.l.b16 %v1121
        %v1420 = vunpack.c.l.b16 %v1122
        %v1421 = vunpack.c.l.b16 %v1123
        %v1422 = vunpack.c.l.b16 %v1124
        %v1423 = vunpack.c.l.b16 %v1125
        %v1424 = vunpack.c.l.b16 %v1126
        %v1425 = vunpack.c.l.b16 %v1127
        %v1426 = vunpack.c.l.b16 %v1128
        %v1427 = vunpack.c.l.b16 %v1129
        %v1428 = vunpack.c.l.b16 %v1130
        %v1429 = vunpack.c.l.b16 %v1131
        %v1430 = vpack.c.b16 %v1415, %v1414
        %v1431 = vpack.c.b16 %v1417, %v1416
        %v1432 = vpack.c.b16 %v1419, %v1418
        %v1433 = vpack.c.b16 %v1421, %v1420
        %v1434 = vpack.c.b16 %v1423, %v1422
        %v1435 = vpack.c.b16 %v1425, %v1424
        %v1436 = vpack.c.b16 %v1427, %v1426
        %v1437 = vpack.c.b16 %v1429, %v1428
        %1446 = vmatprep.subr.bf16.mxu0 0
        %1447 = vmatpush1.bf16.msra.mxu0 %v1430
        %1448 = vmatprep.subr.bf16.mxu0 0
        %1449 = vmatpush1.bf16.msra.mxu0 %v1431
        %1450 = vmatprep.subr.bf16.mxu0 0
        %1451 = vmatpush1.bf16.msra.mxu0 %v1432
        %1452 = vmatprep.subr.bf16.mxu0 0
        %1453 = vmatpush1.bf16.msra.mxu0 %v1433
        %1454 = vmatprep.subr.bf16.mxu0 0
        %1455 = vmatpush1.bf16.msra.mxu0 %v1434
        %1456 = vmatprep.subr.bf16.mxu0 0
        %1457 = vmatpush1.bf16.msra.mxu0 %v1435
        %1458 = vmatprep.subr.bf16.mxu0 0
        %1459 = vmatpush1.bf16.msra.mxu0 %v1436
        %1460 = vmatprep.subr.bf16.mxu0 0
        %1461 = vmatpush1.bf16.msra.mxu0 %v1437
        %1462 = vmatprep.subr.bf16.mxu0 0
        %1463 = vmatpush1.bf16.msra.mxu0 0
        %1464 = vmatprep.subr.bf16.mxu0 0
        %1465 = vmatpush1.bf16.msra.mxu0 0
        %1466 = vmatprep.subr.bf16.mxu0 0
        %1467 = vmatpush1.bf16.msra.mxu0 0
        %1468 = vmatprep.subr.bf16.mxu0 0
        %1469 = vmatpush1.bf16.msra.mxu0 0
        %1470 = vmatprep.subr.bf16.mxu0 0
        %1471 = vmatpush1.bf16.msra.mxu0 0
        %1472 = vmatprep.subr.bf16.mxu0 0
        %1473 = vmatpush1.bf16.msra.mxu0 0
        %1474 = vmatprep.subr.bf16.mxu0 0
        %1475 = vmatpush1.bf16.msra.mxu0 0
        %1476 = vmatprep.subr.bf16.mxu0 0
        %1477 = vmatpush1.bf16.msra.mxu0 0
        %1478 = vmatprep.mubr.bf16.mxu0 0
        %1479 = vmatmul.mubr.bf16.gmra.mrb[0].mxu0 %v1382
        %v1480 = vpop.f32.mrb[0].mxu0
        %v1481 = vadd.f32 %v1296, %v1480
        %v1482 = vpop.f32.mrb[0].mxu0
        %v1483 = vpop.f32.mrb[0].mxu0
        %v1484 = vpop.f32.mrb[0].mxu0
        %1485 = vmatprep.mubr.bf16.mxu0 0
        %1486 = vmatmul.mubr.bf16.gmra.mrb[0].mxu0 %v1383
        %v1487 = vpop.f32.mrb[0].mxu0
        %v1488 = vadd.f32 %v1303, %v1487
        %v1489 = vpop.f32.mrb[0].mxu0
        %v1490 = vpop.f32.mrb[0].mxu0
        %v1491 = vpop.f32.mrb[0].mxu0
        %1492 = vmatprep.mubr.bf16.mxu0 0
        %1493 = vmatmul.mubr.bf16.gmra.mrb[0].mxu0 %v1384
        %v1494 = vpop.f32.mrb[0].mxu0
        %v1495 = vadd.f32 %v1310, %v1494
        %v1496 = vpop.f32.mrb[0].mxu0
        %v1497 = vpop.f32.mrb[0].mxu0
        %v1498 = vpop.f32.mrb[0].mxu0
        %1499 = vmatprep.mubr.bf16.mxu0 0
        %1500 = vmatmul.mubr.bf16.gmra.mrb[0].mxu0 %v1385
        %v1501 = vpop.f32.mrb[0].mxu0
        %v1502 = vadd.f32 %v1317, %v1501
        %v1503 = vpop.f32.mrb[0].mxu0
        %v1504 = vpop.f32.mrb[0].mxu0
        %v1505 = vpop.f32.mrb[0].mxu0
        %1506 = vmatprep.mubr.bf16.mxu0 0
        %1507 = vmatmul.mubr.bf16.gmra.mrb[0].mxu0 %v1386
        %v1508 = vpop.f32.mrb[0].mxu0
        %v1509 = vadd.f32 %v1324, %v1508
        %v1510 = vpop.f32.mrb[0].mxu0
        %v1511 = vpop.f32.mrb[0].mxu0
        %v1512 = vpop.f32.mrb[0].mxu0
        %1513 = vmatprep.mubr.bf16.mxu0 0
        %1514 = vmatmul.mubr.bf16.gmra.mrb[0].mxu0 %v1387
        %v1515 = vpop.f32.mrb[0].mxu0
        %v1516 = vadd.f32 %v1331, %v1515
        %v1517 = vpop.f32.mrb[0].mxu0
        %v1518 = vpop.f32.mrb[0].mxu0
        %v1519 = vpop.f32.mrb[0].mxu0
        %1520 = vmatprep.mubr.bf16.mxu0 0
        %1521 = vmatmul.mubr.bf16.gmra.mrb[0].mxu0 %v1388
        %v1522 = vpop.f32.mrb[0].mxu0
        %v1523 = vadd.f32 %v1338, %v1522
        %v1524 = vpop.f32.mrb[0].mxu0
        %v1525 = vpop.f32.mrb[0].mxu0
        %v1526 = vpop.f32.mrb[0].mxu0
        %1527 = vmatprep.mubr.bf16.mxu0 0
        %1528 = vmatmul.mubr.bf16.gmra.mrb[0].mxu0 %v1389
        %v1529 = vpop.f32.mrb[0].mxu0
        %v1530 = vadd.f32 %v1345, %v1529
        %v1531 = vpop.f32.mrb[0].mxu0
        %v1532 = vpop.f32.mrb[0].mxu0
        %v1533 = vpop.f32.mrb[0].mxu0
        %1534 = vdwg.mxu0
        %s1535 = scalar_lea.vmem %s364, 8 [#allocation5]
        %v1536 = vld [vmem:[%s1535] sm:$0xf]
        %v1537 = vld [vmem:[%s1535 + $0x4] sm:$0xf]
        %v1538 = vld [vmem:[%s1535 + $0x8] sm:$0xf]
        %v1539 = vld [vmem:[%s1535 + $0xc] sm:$0xf]
        %v1540 = vld [vmem:[%s1535 + $0x10] sm:$0xf]
        %v1541 = vld [vmem:[%s1535 + $0x14] sm:$0xf]
        %v1542 = vld [vmem:[%s1535 + $0x18] sm:$0xf]
        %v1543 = vld [vmem:[%s1535 + $0x1c] sm:$0xf]
        %v1544 = vld [vmem:[%s1535 + $0x20] sm:$0xf]
        %v1545 = vld [vmem:[%s1535 + $0x24] sm:$0xf]
        %v1546 = vld [vmem:[%s1535 + $0x28] sm:$0xf]
        %v1547 = vld [vmem:[%s1535 + $0x2c] sm:$0xf]
        %v1548 = vld [vmem:[%s1535 + $0x30] sm:$0xf]
        %v1549 = vld [vmem:[%s1535 + $0x34] sm:$0xf]
        %v1550 = vld [vmem:[%s1535 + $0x38] sm:$0xf]
        %v1551 = vld [vmem:[%s1535 + $0x3c] sm:$0xf]
        %s1552 = scalar_lea.vmem [#allocation10], 448
        %v1553 = vld [vmem:[%s1552] sm:$0xf]
        %v1554 = vld [vmem:[%s1552 + $0x4] sm:$0xf]
        %v1555 = vld [vmem:[%s1552 + $0x8] sm:$0xf]
        %v1556 = vld [vmem:[%s1552 + $0xc] sm:$0xf]
        %v1557 = vld [vmem:[%s1552 + $0x10] sm:$0xf]
        %v1558 = vld [vmem:[%s1552 + $0x14] sm:$0xf]
        %v1559 = vld [vmem:[%s1552 + $0x18] sm:$0xf]
        %v1560 = vld [vmem:[%s1552 + $0x1c] sm:$0xf]
        %v1561 = vld [vmem:[%s1552 + $0x20] sm:$0xf]
        %v1562 = vld [vmem:[%s1552 + $0x24] sm:$0xf]
        %v1563 = vld [vmem:[%s1552 + $0x28] sm:$0xf]
        %v1564 = vld [vmem:[%s1552 + $0x2c] sm:$0xf]
        %v1565 = vld [vmem:[%s1552 + $0x30] sm:$0xf]
        %v1566 = vld [vmem:[%s1552 + $0x34] sm:$0xf]
        %v1567 = vld [vmem:[%s1552 + $0x38] sm:$0xf]
        %v1568 = vld [vmem:[%s1552 + $0x3c] sm:$0xf]
        %v1585 = vunpack.c.l.b16 %v1536
        %v1586 = vunpack.c.l.b16 %v1537
        %v1587 = vunpack.c.l.b16 %v1538
        %v1588 = vunpack.c.l.b16 %v1539
        %v1589 = vunpack.c.l.b16 %v1540
        %v1590 = vunpack.c.l.b16 %v1541
        %v1591 = vunpack.c.l.b16 %v1542
        %v1592 = vunpack.c.l.b16 %v1543
        %v1593 = vunpack.c.l.b16 %v1544
        %v1594 = vunpack.c.l.b16 %v1545
        %v1595 = vunpack.c.l.b16 %v1546
        %v1596 = vunpack.c.l.b16 %v1547
        %v1597 = vunpack.c.l.b16 %v1548
        %v1598 = vunpack.c.l.b16 %v1549
        %v1599 = vunpack.c.l.b16 %v1550
        %v1600 = vunpack.c.l.b16 %v1551
        %v1601 = vpack.c.b16 %v1586, %v1585
        %v1602 = vpack.c.b16 %v1588, %v1587
        %v1603 = vpack.c.b16 %v1590, %v1589
        %v1604 = vpack.c.b16 %v1592, %v1591
        %v1605 = vpack.c.b16 %v1594, %v1593
        %v1606 = vpack.c.b16 %v1596, %v1595
        %v1607 = vpack.c.b16 %v1598, %v1597
        %v1608 = vpack.c.b16 %v1600, %v1599
        %v1633 = vunpack.c.l.b16 %v1553
        %v1634 = vunpack.c.l.b16 %v1554
        %v1635 = vunpack.c.l.b16 %v1555
        %v1636 = vunpack.c.l.b16 %v1556
        %v1637 = vunpack.c.l.b16 %v1557
        %v1638 = vunpack.c.l.b16 %v1558
        %v1639 = vunpack.c.l.b16 %v1559
        %v1640 = vunpack.c.l.b16 %v1560
        %v1641 = vunpack.c.l.b16 %v1561
        %v1642 = vunpack.c.l.b16 %v1562
        %v1643 = vunpack.c.l.b16 %v1563
        %v1644 = vunpack.c.l.b16 %v1564
        %v1645 = vunpack.c.l.b16 %v1565
        %v1646 = vunpack.c.l.b16 %v1566
        %v1647 = vunpack.c.l.b16 %v1567
        %v1648 = vunpack.c.l.b16 %v1568
        %v1649 = vpack.c.b16 %v1634, %v1633
        %v1650 = vpack.c.b16 %v1636, %v1635
        %v1651 = vpack.c.b16 %v1638, %v1637
        %v1652 = vpack.c.b16 %v1640, %v1639
        %v1653 = vpack.c.b16 %v1642, %v1641
        %v1654 = vpack.c.b16 %v1644, %v1643
        %v1655 = vpack.c.b16 %v1646, %v1645
        %v1656 = vpack.c.b16 %v1648, %v1647
        %1665 = vmatprep.subr.bf16.mxu0 0
        %1666 = vmatpush1.bf16.msra.mxu0 %v1649
        %1667 = vmatprep.subr.bf16.mxu0 0
        %1668 = vmatpush1.bf16.msra.mxu0 %v1650
        %1669 = vmatprep.subr.bf16.mxu0 0
        %1670 = vmatpush1.bf16.msra.mxu0 %v1651
        %1671 = vmatprep.subr.bf16.mxu0 0
        %1672 = vmatpush1.bf16.msra.mxu0 %v1652
        %1673 = vmatprep.subr.bf16.mxu0 0
        %1674 = vmatpush1.bf16.msra.mxu0 %v1653
        %1675 = vmatprep.subr.bf16.mxu0 0
        %1676 = vmatpush1.bf16.msra.mxu0 %v1654
        %1677 = vmatprep.subr.bf16.mxu0 0
        %1678 = vmatpush1.bf16.msra.mxu0 %v1655
        %1679 = vmatprep.subr.bf16.mxu0 0
        %1680 = vmatpush1.bf16.msra.mxu0 %v1656
        %1681 = vmatprep.subr.bf16.mxu0 0
        %1682 = vmatpush1.bf16.msra.mxu0 0
        %1683 = vmatprep.subr.bf16.mxu0 0
        %1684 = vmatpush1.bf16.msra.mxu0 0
        %1685 = vmatprep.subr.bf16.mxu0 0
        %1686 = vmatpush1.bf16.msra.mxu0 0
        %1687 = vmatprep.subr.bf16.mxu0 0
        %1688 = vmatpush1.bf16.msra.mxu0 0
        %1689 = vmatprep.subr.bf16.mxu0 0
        %1690 = vmatpush1.bf16.msra.mxu0 0
        %1691 = vmatprep.subr.bf16.mxu0 0
        %1692 = vmatpush1.bf16.msra.mxu0 0
        %1693 = vmatprep.subr.bf16.mxu0 0
        %1694 = vmatpush1.bf16.msra.mxu0 0
        %1695 = vmatprep.subr.bf16.mxu0 0
        %1696 = vmatpush1.bf16.msra.mxu0 0
        %1697 = vmatprep.mubr.bf16.mxu0 0
        %1698 = vmatmul.mubr.bf16.gmra.mrb[0].mxu0 %v1601
        %v1699 = vpop.f32.mrb[0].mxu0
        %v1700 = vadd.f32 0.0, %v1699
        %v1701 = vpop.f32.mrb[0].mxu0
        %v1702 = vpop.f32.mrb[0].mxu0
        %v1703 = vpop.f32.mrb[0].mxu0
        %1704 = vmatprep.mubr.bf16.mxu0 0
        %1705 = vmatmul.mubr.bf16.gmra.mrb[0].mxu0 %v1602
        %v1706 = vpop.f32.mrb[0].mxu0
        %v1707 = vadd.f32 0.0, %v1706
        %v1708 = vpop.f32.mrb[0].mxu0
        %v1709 = vpop.f32.mrb[0].mxu0
        %v1710 = vpop.f32.mrb[0].mxu0
        %1711 = vmatprep.mubr.bf16.mxu0 0
        %1712 = vmatmul.mubr.bf16.gmra.mrb[0].mxu0 %v1603
        %v1713 = vpop.f32.mrb[0].mxu0
        %v1714 = vadd.f32 0.0, %v1713
        %v1715 = vpop.f32.mrb[0].mxu0
        %v1716 = vpop.f32.mrb[0].mxu0
        %v1717 = vpop.f32.mrb[0].mxu0
        %1718 = vmatprep.mubr.bf16.mxu0 0
        %1719 = vmatmul.mubr.bf16.gmra.mrb[0].mxu0 %v1604
        %v1720 = vpop.f32.mrb[0].mxu0
        %v1721 = vadd.f32 0.0, %v1720
        %v1722 = vpop.f32.mrb[0].mxu0
        %v1723 = vpop.f32.mrb[0].mxu0
        %v1724 = vpop.f32.mrb[0].mxu0
        %1725 = vmatprep.mubr.bf16.mxu0 0
        %1726 = vmatmul.mubr.bf16.gmra.mrb[0].mxu0 %v1605
        %v1727 = vpop.f32.mrb[0].mxu0
        %v1728 = vadd.f32 0.0, %v1727
        %v1729 = vpop.f32.mrb[0].mxu0
        %v1730 = vpop.f32.mrb[0].mxu0
        %v1731 = vpop.f32.mrb[0].mxu0
        %1732 = vmatprep.mubr.bf16.mxu0 0
        %1733 = vmatmul.mubr.bf16.gmra.mrb[0].mxu0 %v1606
        %v1734 = vpop.f32.mrb[0].mxu0
        %v1735 = vadd.f32 0.0, %v1734
        %v1736 = vpop.f32.mrb[0].mxu0
        %v1737 = vpop.f32.mrb[0].mxu0
        %v1738 = vpop.f32.mrb[0].mxu0
        %1739 = vmatprep.mubr.bf16.mxu0 0
        %1740 = vmatmul.mubr.bf16.gmra.mrb[0].mxu0 %v1607
        %v1741 = vpop.f32.mrb[0].mxu0
        %v1742 = vadd.f32 0.0, %v1741
        %v1743 = vpop.f32.mrb[0].mxu0
        %v1744 = vpop.f32.mrb[0].mxu0
        %v1745 = vpop.f32.mrb[0].mxu0
        %1746 = vmatprep.mubr.bf16.mxu0 0
        %1747 = vmatmul.mubr.bf16.gmra.mrb[0].mxu0 %v1608
        %v1748 = vpop.f32.mrb[0].mxu0
        %v1749 = vadd.f32 0.0, %v1748
        %v1750 = vpop.f32.mrb[0].mxu0
        %v1751 = vpop.f32.mrb[0].mxu0
        %v1752 = vpop.f32.mrb[0].mxu0
        %1753 = vdwg.mxu0
        %v1754 = vadd.f32 %v1481, %v1700
        %v1755 = vadd.f32 %v1488, %v1707
        %v1756 = vadd.f32 %v1495, %v1714
        %v1757 = vadd.f32 %v1502, %v1721
        %v1758 = vadd.f32 %v1509, %v1728
        %v1759 = vadd.f32 %v1516, %v1735
        %v1760 = vadd.f32 %v1523, %v1742
        %v1761 = vadd.f32 %v1530, %v1749
        %s1762 = scalar_lea.vmem [#allocation10], 128
        %v1763 = vld [vmem:[%s1762] sm:$0xf]
        %v1764 = vld [vmem:[%s1762 + $0x4] sm:$0xf]
        %v1765 = vld [vmem:[%s1762 + $0x8] sm:$0xf]
        %v1766 = vld [vmem:[%s1762 + $0xc] sm:$0xf]
        %v1767 = vld [vmem:[%s1762 + $0x10] sm:$0xf]
        %v1768 = vld [vmem:[%s1762 + $0x14] sm:$0xf]
        %v1769 = vld [vmem:[%s1762 + $0x18] sm:$0xf]
        %v1770 = vld [vmem:[%s1762 + $0x1c] sm:$0xf]
        %v1771 = vld [vmem:[%s1762 + $0x20] sm:$0xf]
        %v1772 = vld [vmem:[%s1762 + $0x24] sm:$0xf]
        %v1773 = vld [vmem:[%s1762 + $0x28] sm:$0xf]
        %v1774 = vld [vmem:[%s1762 + $0x2c] sm:$0xf]
        %v1775 = vld [vmem:[%s1762 + $0x30] sm:$0xf]
        %v1776 = vld [vmem:[%s1762 + $0x34] sm:$0xf]
        %v1777 = vld [vmem:[%s1762 + $0x38] sm:$0xf]
        %v1778 = vld [vmem:[%s1762 + $0x3c] sm:$0xf]
        %s1779 = scalar_lea.vmem [#allocation10], 320
        %v1780 = vld [vmem:[%s1779] sm:$0xf]
        %v1781 = vld [vmem:[%s1779 + $0x4] sm:$0xf]
        %v1782 = vld [vmem:[%s1779 + $0x8] sm:$0xf]
        %v1783 = vld [vmem:[%s1779 + $0xc] sm:$0xf]
        %v1784 = vld [vmem:[%s1779 + $0x10] sm:$0xf]
        %v1785 = vld [vmem:[%s1779 + $0x14] sm:$0xf]
        %v1786 = vld [vmem:[%s1779 + $0x18] sm:$0xf]
        %v1787 = vld [vmem:[%s1779 + $0x1c] sm:$0xf]
        %v1788 = vld [vmem:[%s1779 + $0x20] sm:$0xf]
        %v1789 = vld [vmem:[%s1779 + $0x24] sm:$0xf]
        %v1790 = vld [vmem:[%s1779 + $0x28] sm:$0xf]
        %v1791 = vld [vmem:[%s1779 + $0x2c] sm:$0xf]
        %v1792 = vld [vmem:[%s1779 + $0x30] sm:$0xf]
        %v1793 = vld [vmem:[%s1779 + $0x34] sm:$0xf]
        %v1794 = vld [vmem:[%s1779 + $0x38] sm:$0xf]
        %v1795 = vld [vmem:[%s1779 + $0x3c] sm:$0xf]
        %v1812 = vunpack.c.l.b16 %v1780
        %v1813 = vunpack.c.l.b16 %v1781
        %v1814 = vunpack.c.l.b16 %v1782
        %v1815 = vunpack.c.l.b16 %v1783
        %v1816 = vunpack.c.l.b16 %v1784
        %v1817 = vunpack.c.l.b16 %v1785
        %v1818 = vunpack.c.l.b16 %v1786
        %v1819 = vunpack.c.l.b16 %v1787
        %v1820 = vunpack.c.l.b16 %v1788
        %v1821 = vunpack.c.l.b16 %v1789
        %v1822 = vunpack.c.l.b16 %v1790
        %v1823 = vunpack.c.l.b16 %v1791
        %v1824 = vunpack.c.l.b16 %v1792
        %v1825 = vunpack.c.l.b16 %v1793
        %v1826 = vunpack.c.l.b16 %v1794
        %v1827 = vunpack.c.l.b16 %v1795
        %v1828 = vpack.c.b16 %v1813, %v1812
        %v1829 = vpack.c.b16 %v1815, %v1814
        %v1830 = vpack.c.b16 %v1817, %v1816
        %v1831 = vpack.c.b16 %v1819, %v1818
        %v1832 = vpack.c.b16 %v1821, %v1820
        %v1833 = vpack.c.b16 %v1823, %v1822
        %v1834 = vpack.c.b16 %v1825, %v1824
        %v1835 = vpack.c.b16 %v1827, %v1826
        %1844 = vmatprep.subr.bf16.mxu0 0
        %1845 = vmatpush1.bf16.msra.mxu0 %v1828
        %1846 = vmatprep.subr.bf16.mxu0 0
        %1847 = vmatpush1.bf16.msra.mxu0 %v1829
        %1848 = vmatprep.subr.bf16.mxu0 0
        %1849 = vmatpush1.bf16.msra.mxu0 %v1830
        %1850 = vmatprep.subr.bf16.mxu0 0
        %1851 = vmatpush1.bf16.msra.mxu0 %v1831
        %1852 = vmatprep.subr.bf16.mxu0 0
        %1853 = vmatpush1.bf16.msra.mxu0 %v1832
        %1854 = vmatprep.subr.bf16.mxu0 0
        %1855 = vmatpush1.bf16.msra.mxu0 %v1833
        %1856 = vmatprep.subr.bf16.mxu0 0
        %1857 = vmatpush1.bf16.msra.mxu0 %v1834
        %1858 = vmatprep.subr.bf16.mxu0 0
        %1859 = vmatpush1.bf16.msra.mxu0 %v1835
        %1860 = vmatprep.subr.bf16.mxu0 0
        %1861 = vmatpush1.bf16.msra.mxu0 0
        %1862 = vmatprep.subr.bf16.mxu0 0
        %1863 = vmatpush1.bf16.msra.mxu0 0
        %1864 = vmatprep.subr.bf16.mxu0 0
        %1865 = vmatpush1.bf16.msra.mxu0 0
        %1866 = vmatprep.subr.bf16.mxu0 0
        %1867 = vmatpush1.bf16.msra.mxu0 0
        %1868 = vmatprep.subr.bf16.mxu0 0
        %1869 = vmatpush1.bf16.msra.mxu0 0
        %1870 = vmatprep.subr.bf16.mxu0 0
        %1871 = vmatpush1.bf16.msra.mxu0 0
        %1872 = vmatprep.subr.bf16.mxu0 0
        %1873 = vmatpush1.bf16.msra.mxu0 0
        %1874 = vmatprep.subr.bf16.mxu0 0
        %1875 = vmatpush1.bf16.msra.mxu0 0
        %1876 = vmatprep.mubr.bf16.mxu0 0
        %1877 = vmatmul.mubr.bf16.gmra.mrb[0].mxu0 %v534
        %v1878 = vpop.f32.mrb[0].mxu0
        %v1879 = vadd.f32 0.0, %v1878
        %v1880 = vpop.f32.mrb[0].mxu0
        %v1881 = vpop.f32.mrb[0].mxu0
        %v1882 = vadd.f32 0.0, %v1881
        %v1883 = vpop.f32.mrb[0].mxu0
        %1884 = vmatprep.mubr.bf16.mxu0 0
        %1885 = vmatmul.mubr.bf16.gmra.mrb[0].mxu0 %v535
        %v1886 = vpop.f32.mrb[0].mxu0
        %v1887 = vadd.f32 0.0, %v1886
        %v1888 = vpop.f32.mrb[0].mxu0
        %v1889 = vpop.f32.mrb[0].mxu0
        %v1890 = vadd.f32 0.0, %v1889
        %v1891 = vpop.f32.mrb[0].mxu0
        %1892 = vmatprep.mubr.bf16.mxu0 0
        %1893 = vmatmul.mubr.bf16.gmra.mrb[0].mxu0 %v536
        %v1894 = vpop.f32.mrb[0].mxu0
        %v1895 = vadd.f32 0.0, %v1894
        %v1896 = vpop.f32.mrb[0].mxu0
        %v1897 = vpop.f32.mrb[0].mxu0
        %v1898 = vadd.f32 0.0, %v1897
        %v1899 = vpop.f32.mrb[0].mxu0
        %1900 = vmatprep.mubr.bf16.mxu0 0
        %1901 = vmatmul.mubr.bf16.gmra.mrb[0].mxu0 %v537
        %v1902 = vpop.f32.mrb[0].mxu0
        %v1903 = vadd.f32 0.0, %v1902
        %v1904 = vpop.f32.mrb[0].mxu0
        %v1905 = vpop.f32.mrb[0].mxu0
        %v1906 = vadd.f32 0.0, %v1905
        %v1907 = vpop.f32.mrb[0].mxu0
        %1908 = vmatprep.mubr.bf16.mxu0 0
        %1909 = vmatmul.mubr.bf16.gmra.mrb[0].mxu0 %v538
        %v1910 = vpop.f32.mrb[0].mxu0
        %v1911 = vadd.f32 0.0, %v1910
        %v1912 = vpop.f32.mrb[0].mxu0
        %v1913 = vpop.f32.mrb[0].mxu0
        %v1914 = vadd.f32 0.0, %v1913
        %v1915 = vpop.f32.mrb[0].mxu0
        %1916 = vmatprep.mubr.bf16.mxu0 0
        %1917 = vmatmul.mubr.bf16.gmra.mrb[0].mxu0 %v539
        %v1918 = vpop.f32.mrb[0].mxu0
        %v1919 = vadd.f32 0.0, %v1918
        %v1920 = vpop.f32.mrb[0].mxu0
        %v1921 = vpop.f32.mrb[0].mxu0
        %v1922 = vadd.f32 0.0, %v1921
        %v1923 = vpop.f32.mrb[0].mxu0
        %1924 = vmatprep.mubr.bf16.mxu0 0
        %1925 = vmatmul.mubr.bf16.gmra.mrb[0].mxu0 %v540
        %v1926 = vpop.f32.mrb[0].mxu0
        %v1927 = vadd.f32 0.0, %v1926
        %v1928 = vpop.f32.mrb[0].mxu0
        %v1929 = vpop.f32.mrb[0].mxu0
        %v1930 = vadd.f32 0.0, %v1929
        %v1931 = vpop.f32.mrb[0].mxu0
        %1932 = vmatprep.mubr.bf16.mxu0 0
        %1933 = vmatmul.mubr.bf16.gmra.mrb[0].mxu0 %v541
        %v1934 = vpop.f32.mrb[0].mxu0
        %v1935 = vadd.f32 0.0, %v1934
        %v1936 = vpop.f32.mrb[0].mxu0
        %v1937 = vpop.f32.mrb[0].mxu0
        %v1938 = vadd.f32 0.0, %v1937
        %v1939 = vpop.f32.mrb[0].mxu0
        %1940 = vdwg.mxu0
        %v1957 = vunpack.c.l.b16 %v1763
        %v1958 = vunpack.c.l.b16 %v1764
        %v1959 = vunpack.c.l.b16 %v1765
        %v1960 = vunpack.c.l.b16 %v1766
        %v1961 = vunpack.c.l.b16 %v1767
        %v1962 = vunpack.c.l.b16 %v1768
        %v1963 = vunpack.c.l.b16 %v1769
        %v1964 = vunpack.c.l.b16 %v1770
        %v1965 = vunpack.c.l.b16 %v1771
        %v1966 = vunpack.c.l.b16 %v1772
        %v1967 = vunpack.c.l.b16 %v1773
        %v1968 = vunpack.c.l.b16 %v1774
        %v1969 = vunpack.c.l.b16 %v1775
        %v1970 = vunpack.c.l.b16 %v1776
        %v1971 = vunpack.c.l.b16 %v1777
        %v1972 = vunpack.c.l.b16 %v1778
        %v1973 = vpack.c.b16 %v1958, %v1957
        %v1974 = vpack.c.b16 %v1960, %v1959
        %v1975 = vpack.c.b16 %v1962, %v1961
        %v1976 = vpack.c.b16 %v1964, %v1963
        %v1977 = vpack.c.b16 %v1966, %v1965
        %v1978 = vpack.c.b16 %v1968, %v1967
        %v1979 = vpack.c.b16 %v1970, %v1969
        %v1980 = vpack.c.b16 %v1972, %v1971
        %1989 = vmatprep.subr.bf16.mxu0 0
        %1990 = vmatpush1.bf16.msra.mxu0 %v1973
        %1991 = vmatprep.subr.bf16.mxu0 0
        %1992 = vmatpush1.bf16.msra.mxu0 %v1974
        %1993 = vmatprep.subr.bf16.mxu0 0
        %1994 = vmatpush1.bf16.msra.mxu0 %v1975
        %1995 = vmatprep.subr.bf16.mxu0 0
        %1996 = vmatpush1.bf16.msra.mxu0 %v1976
        %1997 = vmatprep.subr.bf16.mxu0 0
        %1998 = vmatpush1.bf16.msra.mxu0 %v1977
        %1999 = vmatprep.subr.bf16.mxu0 0
        %2000 = vmatpush1.bf16.msra.mxu0 %v1978
        %2001 = vmatprep.subr.bf16.mxu0 0
        %2002 = vmatpush1.bf16.msra.mxu0 %v1979
        %2003 = vmatprep.subr.bf16.mxu0 0
        %2004 = vmatpush1.bf16.msra.mxu0 %v1980
        %2005 = vmatprep.subr.bf16.mxu0 0
        %2006 = vmatpush1.bf16.msra.mxu0 0
        %2007 = vmatprep.subr.bf16.mxu0 0
        %2008 = vmatpush1.bf16.msra.mxu0 0
        %2009 = vmatprep.subr.bf16.mxu0 0
        %2010 = vmatpush1.bf16.msra.mxu0 0
        %2011 = vmatprep.subr.bf16.mxu0 0
        %2012 = vmatpush1.bf16.msra.mxu0 0
        %2013 = vmatprep.subr.bf16.mxu0 0
        %2014 = vmatpush1.bf16.msra.mxu0 0
        %2015 = vmatprep.subr.bf16.mxu0 0
        %2016 = vmatpush1.bf16.msra.mxu0 0
        %2017 = vmatprep.subr.bf16.mxu0 0
        %2018 = vmatpush1.bf16.msra.mxu0 0
        %2019 = vmatprep.subr.bf16.mxu0 0
        %2020 = vmatpush1.bf16.msra.mxu0 0
        %2021 = vmatprep.mubr.bf16.mxu0 0
        %2022 = vmatmul.mubr.bf16.gmra.mrb[0].mxu0 %v719
        %v2023 = vpop.f32.mrb[0].mxu0
        %v2024 = vadd.f32 %v1879, %v2023
        %v2025 = vpop.f32.mrb[0].mxu0
        %v2026 = vpop.f32.mrb[0].mxu0
        %v2027 = vadd.f32 %v1882, %v2026
        %v2028 = vpop.f32.mrb[0].mxu0
        %2029 = vmatprep.mubr.bf16.mxu0 0
        %2030 = vmatmul.mubr.bf16.gmra.mrb[0].mxu0 %v720
        %v2031 = vpop.f32.mrb[0].mxu0
        %v2032 = vadd.f32 %v1887, %v2031
        %v2033 = vpop.f32.mrb[0].mxu0
        %v2034 = vpop.f32.mrb[0].mxu0
        %v2035 = vadd.f32 %v1890, %v2034
        %v2036 = vpop.f32.mrb[0].mxu0
        %2037 = vmatprep.mubr.bf16.mxu0 0
        %2038 = vmatmul.mubr.bf16.gmra.mrb[0].mxu0 %v721
        %v2039 = vpop.f32.mrb[0].mxu0
        %v2040 = vadd.f32 %v1895, %v2039
        %v2041 = vpop.f32.mrb[0].mxu0
        %v2042 = vpop.f32.mrb[0].mxu0
        %v2043 = vadd.f32 %v1898, %v2042
        %v2044 = vpop.f32.mrb[0].mxu0
        %2045 = vmatprep.mubr.bf16.mxu0 0
        %2046 = vmatmul.mubr.bf16.gmra.mrb[0].mxu0 %v722
        %v2047 = vpop.f32.mrb[0].mxu0
        %v2048 = vadd.f32 %v1903, %v2047
        %v2049 = vpop.f32.mrb[0].mxu0
        %v2050 = vpop.f32.mrb[0].mxu0
        %v2051 = vadd.f32 %v1906, %v2050
        %v2052 = vpop.f32.mrb[0].mxu0
        %2053 = vmatprep.mubr.bf16.mxu0 0
        %2054 = vmatmul.mubr.bf16.gmra.mrb[0].mxu0 %v723
        %v2055 = vpop.f32.mrb[0].mxu0
        %v2056 = vadd.f32 %v1911, %v2055
        %v2057 = vpop.f32.mrb[0].mxu0
        %v2058 = vpop.f32.mrb[0].mxu0
        %v2059 = vadd.f32 %v1914, %v2058
        %v2060 = vpop.f32.mrb[0].mxu0
        %2061 = vmatprep.mubr.bf16.mxu0 0
        %2062 = vmatmul.mubr.bf16.gmra.mrb[0].mxu0 %v724
        %v2063 = vpop.f32.mrb[0].mxu0
        %v2064 = vadd.f32 %v1919, %v2063
        %v2065 = vpop.f32.mrb[0].mxu0
        %v2066 = vpop.f32.mrb[0].mxu0
        %v2067 = vadd.f32 %v1922, %v2066
        %v2068 = vpop.f32.mrb[0].mxu0
        %2069 = vmatprep.mubr.bf16.mxu0 0
        %2070 = vmatmul.mubr.bf16.gmra.mrb[0].mxu0 %v725
        %v2071 = vpop.f32.mrb[0].mxu0
        %v2072 = vadd.f32 %v1927, %v2071
        %v2073 = vpop.f32.mrb[0].mxu0
        %v2074 = vpop.f32.mrb[0].mxu0
        %v2075 = vadd.f32 %v1930, %v2074
        %v2076 = vpop.f32.mrb[0].mxu0
        %2077 = vmatprep.mubr.bf16.mxu0 0
        %2078 = vmatmul.mubr.bf16.gmra.mrb[0].mxu0 %v726
        %v2079 = vpop.f32.mrb[0].mxu0
        %v2080 = vadd.f32 %v1935, %v2079
        %v2081 = vpop.f32.mrb[0].mxu0
        %v2082 = vpop.f32.mrb[0].mxu0
        %v2083 = vadd.f32 %v1938, %v2082
        %v2084 = vpop.f32.mrb[0].mxu0
        %2085 = vdwg.mxu0
        %s2086 = scalar_lea.vmem [#allocation10], 512
        %v2087 = vld [vmem:[%s2086] sm:$0xf]
        %v2088 = vld [vmem:[%s2086 + $0x4] sm:$0xf]
        %v2089 = vld [vmem:[%s2086 + $0x8] sm:$0xf]
        %v2090 = vld [vmem:[%s2086 + $0xc] sm:$0xf]
        %v2091 = vld [vmem:[%s2086 + $0x10] sm:$0xf]
        %v2092 = vld [vmem:[%s2086 + $0x14] sm:$0xf]
        %v2093 = vld [vmem:[%s2086 + $0x18] sm:$0xf]
        %v2094 = vld [vmem:[%s2086 + $0x1c] sm:$0xf]
        %v2095 = vld [vmem:[%s2086 + $0x20] sm:$0xf]
        %v2096 = vld [vmem:[%s2086 + $0x24] sm:$0xf]
        %v2097 = vld [vmem:[%s2086 + $0x28] sm:$0xf]
        %v2098 = vld [vmem:[%s2086 + $0x2c] sm:$0xf]
        %v2099 = vld [vmem:[%s2086 + $0x30] sm:$0xf]
        %v2100 = vld [vmem:[%s2086 + $0x34] sm:$0xf]
        %v2101 = vld [vmem:[%s2086 + $0x38] sm:$0xf]
        %v2102 = vld [vmem:[%s2086 + $0x3c] sm:$0xf]
        %v2119 = vunpack.c.l.b16 %v2087
        %v2120 = vunpack.c.l.b16 %v2088
        %v2121 = vunpack.c.l.b16 %v2089
        %v2122 = vunpack.c.l.b16 %v2090
        %v2123 = vunpack.c.l.b16 %v2091
        %v2124 = vunpack.c.l.b16 %v2092
        %v2125 = vunpack.c.l.b16 %v2093
        %v2126 = vunpack.c.l.b16 %v2094
        %v2127 = vunpack.c.l.b16 %v2095
        %v2128 = vunpack.c.l.b16 %v2096
        %v2129 = vunpack.c.l.b16 %v2097
        %v2130 = vunpack.c.l.b16 %v2098
        %v2131 = vunpack.c.l.b16 %v2099
        %v2132 = vunpack.c.l.b16 %v2100
        %v2133 = vunpack.c.l.b16 %v2101
        %v2134 = vunpack.c.l.b16 %v2102
        %v2135 = vpack.c.b16 %v2120, %v2119
        %v2136 = vpack.c.b16 %v2122, %v2121
        %v2137 = vpack.c.b16 %v2124, %v2123
        %v2138 = vpack.c.b16 %v2126, %v2125
        %v2139 = vpack.c.b16 %v2128, %v2127
        %v2140 = vpack.c.b16 %v2130, %v2129
        %v2141 = vpack.c.b16 %v2132, %v2131
        %v2142 = vpack.c.b16 %v2134, %v2133
        %2151 = vmatprep.subr.bf16.mxu0 0
        %2152 = vmatpush1.bf16.msra.mxu0 %v2135
        %2153 = vmatprep.subr.bf16.mxu0 0
        %2154 = vmatpush1.bf16.msra.mxu0 %v2136
        %2155 = vmatprep.subr.bf16.mxu0 0
        %2156 = vmatpush1.bf16.msra.mxu0 %v2137
        %2157 = vmatprep.subr.bf16.mxu0 0
        %2158 = vmatpush1.bf16.msra.mxu0 %v2138
        %2159 = vmatprep.subr.bf16.mxu0 0
        %2160 = vmatpush1.bf16.msra.mxu0 %v2139
        %2161 = vmatprep.subr.bf16.mxu0 0
        %2162 = vmatpush1.bf16.msra.mxu0 %v2140
        %2163 = vmatprep.subr.bf16.mxu0 0
        %2164 = vmatpush1.bf16.msra.mxu0 %v2141
        %2165 = vmatprep.subr.bf16.mxu0 0
        %2166 = vmatpush1.bf16.msra.mxu0 %v2142
        %2167 = vmatprep.subr.bf16.mxu0 0
        %2168 = vmatpush1.bf16.msra.mxu0 0
        %2169 = vmatprep.subr.bf16.mxu0 0
        %2170 = vmatpush1.bf16.msra.mxu0 0
        %2171 = vmatprep.subr.bf16.mxu0 0
        %2172 = vmatpush1.bf16.msra.mxu0 0
        %2173 = vmatprep.subr.bf16.mxu0 0
        %2174 = vmatpush1.bf16.msra.mxu0 0
        %2175 = vmatprep.subr.bf16.mxu0 0
        %2176 = vmatpush1.bf16.msra.mxu0 0
        %2177 = vmatprep.subr.bf16.mxu0 0
        %2178 = vmatpush1.bf16.msra.mxu0 0
        %2179 = vmatprep.subr.bf16.mxu0 0
        %2180 = vmatpush1.bf16.msra.mxu0 0
        %2181 = vmatprep.subr.bf16.mxu0 0
        %2182 = vmatpush1.bf16.msra.mxu0 0
        %2183 = vmatprep.mubr.bf16.mxu0 0
        %2184 = vmatmul.mubr.bf16.gmra.mrb[0].mxu0 %v938
        %v2185 = vpop.f32.mrb[0].mxu0
        %v2186 = vadd.f32 0.0, %v2185
        %v2187 = vpop.f32.mrb[0].mxu0
        %v2188 = vpop.f32.mrb[0].mxu0
        %v2189 = vadd.f32 0.0, %v2188
        %v2190 = vpop.f32.mrb[0].mxu0
        %2191 = vmatprep.mubr.bf16.mxu0 0
        %2192 = vmatmul.mubr.bf16.gmra.mrb[0].mxu0 %v939
        %v2193 = vpop.f32.mrb[0].mxu0
        %v2194 = vadd.f32 0.0, %v2193
        %v2195 = vpop.f32.mrb[0].mxu0
        %v2196 = vpop.f32.mrb[0].mxu0
        %v2197 = vadd.f32 0.0, %v2196
        %v2198 = vpop.f32.mrb[0].mxu0
        %2199 = vmatprep.mubr.bf16.mxu0 0
        %2200 = vmatmul.mubr.bf16.gmra.mrb[0].mxu0 %v940
        %v2201 = vpop.f32.mrb[0].mxu0
        %v2202 = vadd.f32 0.0, %v2201
        %v2203 = vpop.f32.mrb[0].mxu0
        %v2204 = vpop.f32.mrb[0].mxu0
        %v2205 = vadd.f32 0.0, %v2204
        %v2206 = vpop.f32.mrb[0].mxu0
        %2207 = vmatprep.mubr.bf16.mxu0 0
        %2208 = vmatmul.mubr.bf16.gmra.mrb[0].mxu0 %v941
        %v2209 = vpop.f32.mrb[0].mxu0
        %v2210 = vadd.f32 0.0, %v2209
        %v2211 = vpop.f32.mrb[0].mxu0
        %v2212 = vpop.f32.mrb[0].mxu0
        %v2213 = vadd.f32 0.0, %v2212
        %v2214 = vpop.f32.mrb[0].mxu0
        %2215 = vmatprep.mubr.bf16.mxu0 0
        %2216 = vmatmul.mubr.bf16.gmra.mrb[0].mxu0 %v942
        %v2217 = vpop.f32.mrb[0].mxu0
        %v2218 = vadd.f32 0.0, %v2217
        %v2219 = vpop.f32.mrb[0].mxu0
        %v2220 = vpop.f32.mrb[0].mxu0
        %v2221 = vadd.f32 0.0, %v2220
        %v2222 = vpop.f32.mrb[0].mxu0
        %2223 = vmatprep.mubr.bf16.mxu0 0
        %2224 = vmatmul.mubr.bf16.gmra.mrb[0].mxu0 %v943
        %v2225 = vpop.f32.mrb[0].mxu0
        %v2226 = vadd.f32 0.0, %v2225
        %v2227 = vpop.f32.mrb[0].mxu0
        %v2228 = vpop.f32.mrb[0].mxu0
        %v2229 = vadd.f32 0.0, %v2228
        %v2230 = vpop.f32.mrb[0].mxu0
        %2231 = vmatprep.mubr.bf16.mxu0 0
        %2232 = vmatmul.mubr.bf16.gmra.mrb[0].mxu0 %v944
        %v2233 = vpop.f32.mrb[0].mxu0
        %v2234 = vadd.f32 0.0, %v2233
        %v2235 = vpop.f32.mrb[0].mxu0
        %v2236 = vpop.f32.mrb[0].mxu0
        %v2237 = vadd.f32 0.0, %v2236
        %v2238 = vpop.f32.mrb[0].mxu0
        %2239 = vmatprep.mubr.bf16.mxu0 0
        %2240 = vmatmul.mubr.bf16.gmra.mrb[0].mxu0 %v945
        %v2241 = vpop.f32.mrb[0].mxu0
        %v2242 = vadd.f32 0.0, %v2241
        %v2243 = vpop.f32.mrb[0].mxu0
        %v2244 = vpop.f32.mrb[0].mxu0
        %v2245 = vadd.f32 0.0, %v2244
        %v2246 = vpop.f32.mrb[0].mxu0
        %2247 = vdwg.mxu0
        %v2248 = vadd.f32 %v2024, %v2186
        %v2249 = vadd.f32 %v2027, %v2189
        %v2250 = vadd.f32 %v2032, %v2194
        %v2251 = vadd.f32 %v2035, %v2197
        %v2252 = vadd.f32 %v2040, %v2202
        %v2253 = vadd.f32 %v2043, %v2205
        %v2254 = vadd.f32 %v2048, %v2210
        %v2255 = vadd.f32 %v2051, %v2213
        %v2256 = vadd.f32 %v2056, %v2218
        %v2257 = vadd.f32 %v2059, %v2221
        %v2258 = vadd.f32 %v2064, %v2226
        %v2259 = vadd.f32 %v2067, %v2229
        %v2260 = vadd.f32 %v2072, %v2234
        %v2261 = vadd.f32 %v2075, %v2237
        %v2262 = vadd.f32 %v2080, %v2242
        %v2263 = vadd.f32 %v2083, %v2245
        %v2264 = vadd.f32 %v1091, %v1754
        %v2265 = vadd.f32 %v1092, %v1755
        %v2266 = vadd.f32 %v1093, %v1756
        %v2267 = vadd.f32 %v1094, %v1757
        %v2268 = vadd.f32 %v1095, %v1758
        %v2269 = vadd.f32 %v1096, %v1759
        %v2270 = vadd.f32 %v1097, %v1760
        %v2271 = vadd.f32 %v1098, %v1761
        %vm2288 = vcmask 1046528
        %v2289 = vrot.slane %v2248, 1
        %v2290 = vrot.slane %v2249, 1
        %v2291 = vsel %vm2288, %v2289, %v2290
        %v2292 = vrot.slane %v2250, 1
        %v2293 = vrot.slane %v2251, 1
        %v2294 = vsel %vm2288, %v2292, %v2293
        %v2295 = vrot.slane %v2252, 1
        %v2296 = vrot.slane %v2253, 1
        %v2297 = vsel %vm2288, %v2295, %v2296
        %v2298 = vrot.slane %v2254, 1
        %v2299 = vrot.slane %v2255, 1
        %v2300 = vsel %vm2288, %v2298, %v2299
        %v2301 = vrot.slane %v2256, 1
        %v2302 = vrot.slane %v2257, 1
        %v2303 = vsel %vm2288, %v2301, %v2302
        %v2304 = vrot.slane %v2258, 1
        %v2305 = vrot.slane %v2259, 1
        %v2306 = vsel %vm2288, %v2304, %v2305
        %v2307 = vrot.slane %v2260, 1
        %v2308 = vrot.slane %v2261, 1
        %v2309 = vsel %vm2288, %v2307, %v2308
        %v2310 = vrot.slane %v2262, 1
        %v2311 = vrot.slane %v2263, 1
        %v2312 = vsel %vm2288, %v2310, %v2311
        %v2321 = vadd.f32 %v2264, %v2291
        %v2322 = vadd.f32 %v2265, %v2294
        %v2323 = vadd.f32 %v2266, %v2297
        %v2324 = vadd.f32 %v2267, %v2300
        %v2325 = vadd.f32 %v2268, %v2303
        %v2326 = vadd.f32 %v2269, %v2306
        %v2327 = vadd.f32 %v2270, %v2309
        %v2328 = vadd.f32 %v2271, %v2312
        %v2329 = vld [vmem:[%s435] sm:$0x1]
        %v2331 = vlaneseq
        %v2332 = vshrl.u32 %v2331, 7
        %v2333 = vsub.s32 0, %v2332
        %v2334 = vrot.slane %v2329, %v2333
        %v2336 = vadd.f32 %v2321, %v2334
        %v2337 = vadd.f32 %v2322, %v2334
        %v2338 = vadd.f32 %v2323, %v2334
        %v2339 = vadd.f32 %v2324, %v2334
        %v2340 = vadd.f32 %v2325, %v2334
        %v2341 = vadd.f32 %v2326, %v2334
        %v2342 = vadd.f32 %v2327, %v2334
        %v2343 = vadd.f32 %v2328, %v2334
        %v2344 = vmax.f32 %v2336, 0.0
        %v2345 = vmax.f32 %v2337, 0.0
        %v2346 = vmax.f32 %v2338, 0.0
        %v2347 = vmax.f32 %v2339, 0.0
        %v2348 = vmax.f32 %v2340, 0.0
        %v2349 = vmax.f32 %v2341, 0.0
        %v2350 = vmax.f32 %v2342, 0.0
        %v2351 = vmax.f32 %v2343, 0.0
        %2352 = vst [vmem:[%s432] sm:$0xf] 0
        %2353 = vst [vmem:[%s432 + $0x4] sm:$0xf] 0
        %2354 = vst [vmem:[%s432 + $0x8] sm:$0xf] 0
        %2355 = vst [vmem:[%s432 + $0xc] sm:$0xf] 0
        %2356 = vst [vmem:[%s432 + $0x10] sm:$0xf] 0
        %2357 = vst [vmem:[%s432 + $0x14] sm:$0xf] 0
        %2358 = vst [vmem:[%s432 + $0x18] sm:$0xf] 0
        %2359 = vst [vmem:[%s432 + $0x1c] sm:$0xf] 0
        %2360 = vst [vmem:[%s432 + $0x20] sm:$0xf] 0
        %2361 = vst [vmem:[%s432 + $0x24] sm:$0xf] 0
        %2362 = vst [vmem:[%s432 + $0x28] sm:$0xf] 0
        %2363 = vst [vmem:[%s432 + $0x2c] sm:$0xf] 0
        %2364 = vst [vmem:[%s432 + $0x30] sm:$0xf] 0
        %2365 = vst [vmem:[%s432 + $0x34] sm:$0xf] 0
        %2366 = vst [vmem:[%s432 + $0x38] sm:$0xf] 0
        %2367 = vst [vmem:[%s432 + $0x3c] sm:$0xf] 0
        %2368 = vst [vmem:[%s432 + $0x40] sm:$0xf] 0
        %2369 = vst [vmem:[%s432 + $0x44] sm:$0xf] 0
        %2370 = vst [vmem:[%s432 + $0x48] sm:$0xf] 0
        %2371 = vst [vmem:[%s432 + $0x4c] sm:$0xf] 0
        %v2372 = vpack.c.bf16 %v2344, %v2344
        %v2373 = vpack.c.bf16 %v2345, %v2345
        %v2374 = vpack.c.bf16 %v2346, %v2346
        %v2375 = vpack.c.bf16 %v2347, %v2347
        %v2376 = vpack.c.bf16 %v2348, %v2348
        %v2377 = vpack.c.bf16 %v2349, %v2349
        %v2378 = vpack.c.bf16 %v2350, %v2350
        %v2379 = vpack.c.bf16 %v2351, %v2351
        %v2388 = vunpack.c.l.b16 %v2372
        %v2389 = vunpack.c.l.b16 %v2373
        %v2390 = vunpack.c.l.b16 %v2374
        %v2391 = vunpack.c.l.b16 %v2375
        %v2392 = vunpack.c.l.b16 %v2376
        %v2393 = vunpack.c.l.b16 %v2377
        %v2394 = vunpack.c.l.b16 %v2378
        %v2395 = vunpack.c.l.b16 %v2379
        %v2396 = vpack.c.b16 %v2388, %v2388
        %v2397 = vpack.c.b16 %v2389, %v2389
        %v2398 = vpack.c.b16 %v2390, %v2390
        %v2399 = vpack.c.b16 %v2391, %v2391
        %v2400 = vpack.c.b16 %v2392, %v2392
        %v2401 = vpack.c.b16 %v2393, %v2393
        %v2402 = vpack.c.b16 %v2394, %v2394
        %v2403 = vpack.c.b16 %v2395, %v2395
        %v2405 = vshrl.u32 %v2396, 16
        %v2407 = vrot.slane %v2405, 7
        %v2408 = vshll.u32 %v2396, 16
        %v2410 = vor.u32 %v2407, %v2408
        %v2411 = vrot.slane %v2407, 4
        %v2413 = vshrl.u32 %v2397, 16
        %v2415 = vrot.slane %v2413, 7
        %v2416 = vshll.u32 %v2397, 16
        %v2418 = vor.u32 %v2415, %v2416
        %v2419 = vrot.slane %v2415, 4
        %v2421 = vshrl.u32 %v2398, 16
        %v2423 = vrot.slane %v2421, 7
        %v2424 = vshll.u32 %v2398, 16
        %v2426 = vor.u32 %v2423, %v2424
        %v2427 = vrot.slane %v2423, 4
        %v2429 = vshrl.u32 %v2399, 16
        %v2431 = vrot.slane %v2429, 7
        %v2432 = vshll.u32 %v2399, 16
        %v2434 = vor.u32 %v2431, %v2432
        %v2435 = vrot.slane %v2431, 4
        %v2437 = vshrl.u32 %v2400, 16
        %v2439 = vrot.slane %v2437, 7
        %v2440 = vshll.u32 %v2400, 16
        %v2442 = vor.u32 %v2439, %v2440
        %v2443 = vrot.slane %v2439, 4
        %v2445 = vshrl.u32 %v2401, 16
        %v2447 = vrot.slane %v2445, 7
        %v2448 = vshll.u32 %v2401, 16
        %v2450 = vor.u32 %v2447, %v2448
        %v2451 = vrot.slane %v2447, 4
        %v2453 = vshrl.u32 %v2402, 16
        %v2455 = vrot.slane %v2453, 7
        %v2456 = vshll.u32 %v2402, 16
        %v2458 = vor.u32 %v2455, %v2456
        %v2459 = vrot.slane %v2455, 4
        %v2461 = vshrl.u32 %v2403, 16
        %v2463 = vrot.slane %v2461, 7
        %v2464 = vshll.u32 %v2403, 16
        %v2466 = vor.u32 %v2463, %v2464
        %v2467 = vrot.slane %v2463, 4
        %s2484 = scalar_lea.vmem %s432, 8 [#allocation11]
        %vm2485 = vcmask 1043456
        %vm2486 = vsmask.f32 7938
        %vm2487 = vmand %vm2485, %vm2486
        %v2488 = vld [vmem:[%s2484] sm:$0xf]
        %v2489 = vsel %vm2487, %v2410, %v2488
        %2490 = vst [vmem:[%s2484] sm:$0xf] %v2489
        %vm2491 = vcmask 1040384
        %vm2492 = vsmask.f32 256
        %vm2493 = vmand %vm2491, %vm2492
        %v2494 = vld [vmem:[%s2484 + $0x4] sm:$0x1]
        %v2495 = vsel %vm2493, %v2411, %v2494
        %2496 = vst [vmem:[%s2484 + $0x4] sm:$0x1] %v2495
        %v2497 = vld [vmem:[%s2484 + $0x8] sm:$0xf]
        %v2498 = vsel %vm2487, %v2418, %v2497
        %2499 = vst [vmem:[%s2484 + $0x8] sm:$0xf] %v2498
        %v2500 = vld [vmem:[%s2484 + $0xc] sm:$0x1]
        %v2501 = vsel %vm2493, %v2419, %v2500
        %2502 = vst [vmem:[%s2484 + $0xc] sm:$0x1] %v2501
        %v2503 = vld [vmem:[%s2484 + $0x10] sm:$0xf]
        %v2504 = vsel %vm2487, %v2426, %v2503
        %2505 = vst [vmem:[%s2484 + $0x10] sm:$0xf] %v2504
        %v2506 = vld [vmem:[%s2484 + $0x14] sm:$0x1]
        %v2507 = vsel %vm2493, %v2427, %v2506
        %2508 = vst [vmem:[%s2484 + $0x14] sm:$0x1] %v2507
        %v2509 = vld [vmem:[%s2484 + $0x18] sm:$0xf]
        %v2510 = vsel %vm2487, %v2434, %v2509
        %2511 = vst [vmem:[%s2484 + $0x18] sm:$0xf] %v2510
        %v2512 = vld [vmem:[%s2484 + $0x1c] sm:$0x1]
        %v2513 = vsel %vm2493, %v2435, %v2512
        %2514 = vst [vmem:[%s2484 + $0x1c] sm:$0x1] %v2513
        %v2515 = vld [vmem:[%s2484 + $0x20] sm:$0xf]
        %v2516 = vsel %vm2487, %v2442, %v2515
        %2517 = vst [vmem:[%s2484 + $0x20] sm:$0xf] %v2516
        %v2518 = vld [vmem:[%s2484 + $0x24] sm:$0x1]
        %v2519 = vsel %vm2493, %v2443, %v2518
        %2520 = vst [vmem:[%s2484 + $0x24] sm:$0x1] %v2519
        %v2521 = vld [vmem:[%s2484 + $0x28] sm:$0xf]
        %v2522 = vsel %vm2487, %v2450, %v2521
        %2523 = vst [vmem:[%s2484 + $0x28] sm:$0xf] %v2522
        %v2524 = vld [vmem:[%s2484 + $0x2c] sm:$0x1]
        %v2525 = vsel %vm2493, %v2451, %v2524
        %2526 = vst [vmem:[%s2484 + $0x2c] sm:$0x1] %v2525
        %v2527 = vld [vmem:[%s2484 + $0x30] sm:$0xf]
        %v2528 = vsel %vm2487, %v2458, %v2527
        %2529 = vst [vmem:[%s2484 + $0x30] sm:$0xf] %v2528
        %v2530 = vld [vmem:[%s2484 + $0x34] sm:$0x1]
        %v2531 = vsel %vm2493, %v2459, %v2530
        %2532 = vst [vmem:[%s2484 + $0x34] sm:$0x1] %v2531
        %v2533 = vld [vmem:[%s2484 + $0x38] sm:$0xf]
        %v2534 = vsel %vm2487, %v2466, %v2533
        %2535 = vst [vmem:[%s2484 + $0x38] sm:$0xf] %v2534
        %v2536 = vld [vmem:[%s2484 + $0x3c] sm:$0x1]
        %v2537 = vsel %vm2493, %v2467, %v2536
        %2538 = vst [vmem:[%s2484 + $0x3c] sm:$0x1] %v2537
        %s2539 = sand.u32 %s207, 1
        %s2540 = scalar_lea.sflag [#allocation4], %s2539
        %s2541 = sand.u32 %s207, 1
        %s2542 = smul.addr %s2541, 80
        %s2543 = scalar_lea.vmem [#allocation11], %s2542
        // Predicated region
        $region65: #{tpu_custom_call.1} parent=43 // pred_check
          %p2544 = pneg %p217
        $region66: #{tpu_custom_call.1} parent=43 // pred_check_branch
          %2546 = sbr.rel (%p2544) target = $region68
        $region67: #{tpu_custom_call.1} parent=43 // pred_region
          %s2548 = ssub.s32 1280, 1280
          %2549 = vsyncadd %s2540, %s2548
          %s2550 = smul.addr %s34, 20
          %s2551 = sadd.s32 %s33, %s2550
          %s2552 = smul.addr %s2551, 64
          %s2553 = scalar_lea.hbm %s6, %s2552
          %s2554 = sshll.u32 %s2543, 4
          %s2555 = int_to_ptr.vmem [resolvable:$true] %s2554
          %2560 = dma.vmem_to_hbm [thread:$0]  %s2555, 1280, %s2553, %s2540, 64, 64, 4
        $region68: #{tpu_custom_call.1} parent=43 // pred_fallthru
          _
      $region44: #{tpu_custom_call.1} parent=5 // pred_fallthru
        _
      %p2561 = scmp.le.s32.totalorder 2, %s24
      // Predicated region
      $region69: #{tpu_custom_call.1} parent=5 // pred_check
        %p2562 = pneg %p2561
      $region70: #{tpu_custom_call.1} parent=5 // pred_check_branch
        %2564 = sbr.rel (%p2562) target = $region72
      $region71: #{tpu_custom_call.1} parent=5 // pred_region
        %s2565 = ssub.s32 %s24, 2
        // Predicated region
        $region73: #{tpu_custom_call.1} parent=71 // pred_check
          %p2566 = pneg %p223
        $region74: #{tpu_custom_call.1} parent=71 // pred_check_branch
          %2568 = sbr.rel (%p2566) target = $region76
        $region75: #{tpu_custom_call.1} parent=71 // pred_region
          %s2569 = sand.u32 %s208, 1
          %s2570 = scalar_lea.sflag [#allocation4], %s2569
          %s2571 = sand.u32 %s208, 1
          %s2572 = smul.addr %s2571, 80
          %s2573 = scalar_lea.vmem [#allocation11], %s2572
          %2574 = dma.done %s2570, 1280
        $region76: #{tpu_custom_call.1} parent=71 // pred_fallthru
          _
      $region72: #{tpu_custom_call.1} parent=5 // pred_fallthru
        _
    $region6: #{tpu_custom_call.1} parent=1 // loop_footer
      %s28 = sadd.s32 1, %s24
    $region7: #{tpu_custom_call.1} parent=1 // loop_footer_branch
      %23 = sbr.rel target = $region3
    $region8: #{tpu_custom_call.1} parent=1 // loop_exit
      _
    %2575 = vsyncpa [#allocation3], 1
    %s2576 = scalar_lea.sflag [#allocation3], 1
    %2577 = vsyncpa %s2576, 1
    %2578 = vsyncpa [#allocation6], 1
    %s2579 = scalar_lea.sflag [#allocation6], 1
    %2580 = vsyncpa %s2579, 1
    %2581 = vsyncpa [#allocation9], 1
    %s2582 = scalar_lea.sflag [#allocation9], 1
    %2583 = vsyncpa %s2582, 1
    %2584 = vsyncpa [#allocation4], 1
    %s2585 = scalar_lea.sflag [#allocation4], 1
    %2586 = vsyncpa %s2585, 1

</llo_original>
